<compile_context>
chip_gen: v6e
topology: v6e:2x2x1
jax: 0.10.0
libtpu: 0.0.40
codegen_flags: <defaults>
</compile_context>

<pallas_src>
import functools

import jax
import jax.numpy as jnp
from jax.experimental import pallas as pl
from jax.experimental.pallas import tpu as pltpu


def _round_up(x, m):
    return ((x + m - 1) // m) * m


# ----------------------------------------------------------------------------
# Fused kernel: 2-layer LSTM over T steps + linear classifier epilogue.
# Gate order follows PyTorch nn.LSTM: [i, f, g, o] chunks of size H.
# ----------------------------------------------------------------------------
def _fused_lstm_kernel(T, Bp, H,
                       x_ref, wih0_ref, whh0_ref, b0_ref,
                       w1_ref, b1_ref, wc_ref, bc_ref,
                       y_ref, logits_ref,
                       z1_scr):
    """Shapes (all f32, everything resident in VMEM):

      x_ref      : (T*Bp, Fp)   time-major flattened, padded input
      wih0_ref   : (Fp, 4H)     layer-0 input->hidden (rows padded with zeros)
      whh0_ref   : (H,  4H)     layer-0 hidden->hidden
      b0_ref     : (1,  4H)     layer-0 b_ih + b_hh
      w1_ref     : (2H, 4H)     layer-1 [W_ih; W_hh] concatenated
      b1_ref     : (1,  4H)     layer-1 b_ih + b_hh
      wc_ref     : (H, C), bc_ref: (1, C)   classifier
      y_ref      : (Bp, T*H)    lane-dense layer-1 hidden-state slab (output)
      logits_ref : (Bp, C)      classifier output
      z1_scr     : (Bp, 2H)     VMEM staging buffer holding [h0_t | h1_{t-1}]
    """
    # ---- amortized layer-0 input projection for ALL timesteps (one matmul) --
    xg = jnp.dot(x_ref[...], wih0_ref[...],
                 preferred_element_type=jnp.float32) + b0_ref[...]   # (T*Bp, 4H)

    # ---- loop-invariant operands hoisted out of the unrolled recurrence -----
    whh0 = whh0_ref[...]                                   # (H, 4H)
    w1 = w1_ref[...]                                       # (2H, 4H)
    b1 = jnp.broadcast_to(b1_ref[...], (Bp, 4 * H))        # broadcast once

    def lstm_cell(gates, c_prev):
        i = jax.nn.sigmoid(gates[:, 0 * H:1 * H])
        f = jax.nn.sigmoid(gates[:, 1 * H:2 * H])
        g = jnp.tanh(gates[:, 2 * H:3 * H])
        o = jax.nn.sigmoid(gates[:, 3 * H:4 * H])
        c_new = f * c_prev + i * g
        h_new = o * jnp.tanh(c_new)
        return h_new, c_new

    # initial state: h = c = 0 for both layers
    z1_scr[...] = jnp.zeros_like(z1_scr)                   # [h0 | h1] staging
    h0 = jnp.zeros((Bp, H), jnp.float32)
    c0 = jnp.zeros((Bp, H), jnp.float32)
    h1 = jnp.zeros((Bp, H), jnp.float32)
    c1 = jnp.zeros((Bp, H), jnp.float32)

    # T is small and static: fully unrolled recurrence, h/c carried in vregs.
    for t in range(T):
        # ---- layer 0: only the recurrent matmul is on the critical path ----
        g0 = xg[t * Bp:(t + 1) * Bp, :] + jnp.dot(
            h0, whh0, preferred_element_type=jnp.float32)
        h0, c0 = lstm_cell(g0, c0)

        # ---- layer 1: single matmul on the VMEM-staged [h0 | h1] operand ---
        z1_scr[:, 0:H] = h0
        g1 = jnp.dot(z1_scr[...], w1, preferred_element_type=jnp.float32) + b1
        h1, c1 = lstm_cell(g1, c1)
        z1_scr[:, H:2 * H] = h1

        # accumulate into the resident output block (bulk HBM writeback later)
        y_ref[:, t * H:(t + 1) * H] = h1

    # ---- classifier epilogue on the final layer-1 hidden state --------------
    # dropout1(p=0.9) is identity in eval/inference mode.
    logits_ref[...] = (
        jnp.dot(h1, wc_ref[...], preferred_element_type=jnp.float32)
        + bc_ref[...]
    )


# ----------------------------------------------------------------------------
# Parameter init (PyTorch-style uniform(-1/sqrt(H), 1/sqrt(H))) and one-time
# layout preparation (padding / weight concatenation) for the fused kernel.
# ----------------------------------------------------------------------------
def init_params(key, input_size, hidden_size, num_classes, num_layers):
    params = {"lstm": [], "cls": {}}
    k = 1.0 / (hidden_size ** 0.5)
    keys = jax.random.split(key, num_layers * 4 + 2)
    ki = 0
    for layer in range(num_layers):
        f_in = input_size if layer == 0 else hidden_size
        w_ih = jax.random.uniform(keys[ki], (f_in, 4 * hidden_size),
                                  jnp.float32, -k, k); ki += 1
        w_hh = jax.random.uniform(keys[ki], (hidden_size, 4 * hidden_size),
                                  jnp.float32, -k, k); ki += 1
        b_ih = jax.random.uniform(keys[ki], (1, 4 * hidden_size),
                                  jnp.float32, -k, k); ki += 1
        b_hh = jax.random.uniform(keys[ki], (1, 4 * hidden_size),
                                  jnp.float32, -k, k); ki += 1
        params["lstm"].append({"w_ih": w_ih, "w_hh": w_hh, "bias": b_ih + b_hh})
    params["cls"]["w"] = jax.random.uniform(keys[ki], (hidden_size, num_classes),
                                            jnp.float32, -k, k); ki += 1
    params["cls"]["b"] = jax.random.uniform(keys[ki], (1, num_classes),
                                            jnp.float32, -k, k)
    return params


def fuse_params(params):
    """One-time layout prep (do this OUTSIDE the hot path):
    pad F_in to a sublane multiple and concatenate layer-1 [W_ih; W_hh]."""
    l0, l1 = params["lstm"]
    f_in = l0["w_ih"].shape[0]
    f_pad = _round_up(f_in, 8)
    return {
        "wih0": jnp.pad(l0["w_ih"], ((0, f_pad - f_in), (0, 0))),   # (Fp, 4H)
        "whh0": l0["w_hh"],                                         # (H,  4H)
        "b0": l0["bias"],                                           # (1,  4H)
        "w1": jnp.concatenate([l1["w_ih"], l1["w_hh"]], axis=0),    # (2H, 4H)
        "b1": l1["bias"],                                           # (1,  4H)
        "w_cls": params["cls"]["w"],                                # (H,  C)
        "b_cls": params["cls"]["b"],                                # (1,  C)
    }


# ----------------------------------------------------------------------------
# Full forward pass: (B, T, input_size) -> (lstm_outputs (B,T,H), logits (B,C))
# ----------------------------------------------------------------------------
@jax.jit
def model_lstm_forward(fused, inputs_bti):
    x = inputs_bti.astype(jnp.float32)
    B, T, F = x.shape
    H = fused["whh0"].shape[0]
    Fp = fused["wih0"].shape[0]
    C = fused["w_cls"].shape[1]
    Bp = _round_up(B, 8)                       # pad batch to a sublane multiple

    # zero-pad batch (sublane) and features (matches zero rows in wih0), then
    # flatten time-major for the bulk layer-0 input projection.
    x = jnp.pad(x, ((0, Bp - B), (0, 0), (0, Fp - F)))            # (Bp, T, Fp)
    x_tm = jnp.transpose(x, (1, 0, 2)).reshape(T * Bp, Fp)        # (T*Bp, Fp)

    y_flat, logits = pl.pallas_call(
        functools.partial(_fused_lstm_kernel, T, Bp, H),
        out_shape=(
            jax.ShapeDtypeStruct((Bp, T * H), jnp.float32),   # lane-dense slab
            jax.ShapeDtypeStruct((Bp, C), jnp.float32),
        ),
        scratch_shapes=[pltpu.VMEM((Bp, 2 * H), jnp.float32)],   # [h0 | h1]
    )(x_tm, fused["wih0"], fused["whh0"], fused["b0"],
      fused["w1"], fused["b1"], fused["w_cls"], fused["b_cls"])

    # (Bp, T*H) -> (B, T, H): batch-first, like the PyTorch module; no transpose.
    lstm_outputs = y_flat[:B].reshape(B, T, H)
    return lstm_outputs, logits[:B]


# ----------------------------------------------------------------------------
# Pure-JAX reference (mirrors nn.LSTM math) for a sanity check.
# ----------------------------------------------------------------------------
def _reference_forward(params, x_bti):
    hp = jax.lax.Precision.HIGHEST
    x = jnp.transpose(x_bti, (1, 0, 2)).astype(jnp.float32)   # (T, B, F)
    T, B, _ = x.shape
    for lp in params["lstm"]:
        H = lp["w_hh"].shape[0]
        h = jnp.zeros((B, H), jnp.float32)
        c = jnp.zeros((B, H), jnp.float32)
        outs = []
        for t in range(T):
            g = (jnp.dot(x[t], lp["w_ih"], precision=hp)
                 + jnp.dot(h, lp["w_hh"], precision=hp) + lp["bias"])
            i = jax.nn.sigmoid(g[:, :H]); f = jax.nn.sigmoid(g[:, H:2 * H])
            gg = jnp.tanh(g[:, 2 * H:3 * H]); o = jax.nn.sigmoid(g[:, 3 * H:])
            c = f * c + i * gg
            h = o * jnp.tanh(c)
            outs.append(h)
        x = jnp.stack(outs, axis=0)
    y = jnp.transpose(x, (1, 0, 2))                            # (B, T, H)
    logits = jnp.dot(y[:, -1, :], params["cls"]["w"], precision=hp) \
        + params["cls"]["b"]
    return y, logits


if __name__ == "__main__":
    # Shapes from the module spec: input_size=29, hidden_size=64, 2 classes,
    # 2 stacked LSTM layers; small batch/sequence for the smoke test.
    batch = 2
    seq_len = 8
    input_size = 29
    hidden_size = 64
    num_classes = 2
    num_layers = 2

    key = jax.random.PRNGKey(0)
    k_params, k_x = jax.random.split(key)

    params = init_params(k_params, input_size, hidden_size, num_classes,
                         num_layers)
    fused = fuse_params(params)
    x = jax.random.normal(k_x, (batch, seq_len, input_size), jnp.float32)

    lstm_outputs, logits = model_lstm_forward(fused, x)
    jax.block_until_ready((lstm_outputs, logits))

    assert lstm_outputs.shape == (batch, seq_len, hidden_size)
    assert logits.shape == (batch, num_classes)

    # Numerical sanity check vs. plain-JAX reference (loose tolerance to stay
    # robust to MXU f32 accumulation-order / precision differences).
    ref_y, ref_logits = _reference_forward(params, x)
    assert bool(jnp.all(jnp.isfinite(lstm_outputs)))
    assert bool(jnp.all(jnp.isfinite(logits)))
    assert bool(jnp.allclose(lstm_outputs, ref_y, atol=2e-2, rtol=2e-2))
    assert bool(jnp.allclose(logits, ref_logits, atol=2e-2, rtol=2e-2))

    print("KERNEL_OK")
</pallas_src>

<mosaic_0001>
module attributes {stable_mosaic.version = 11 : i64} {
  func.func @_fused_lstm_kernel(%arg0: memref<64x32xf32, #tpu.memory_space<vmem>>, %arg1: memref<32x256xf32, #tpu.memory_space<vmem>>, %arg2: memref<64x256xf32, #tpu.memory_space<vmem>>, %arg3: memref<1x256xf32, #tpu.memory_space<vmem>>, %arg4: memref<128x256xf32, #tpu.memory_space<vmem>>, %arg5: memref<1x256xf32, #tpu.memory_space<vmem>>, %arg6: memref<64x2xf32, #tpu.memory_space<vmem>>, %arg7: memref<1x2xf32, #tpu.memory_space<vmem>>, %arg8: memref<8x512xf32, #tpu.memory_space<vmem>>, %arg9: memref<8x2xf32, #tpu.memory_space<vmem>>, %arg10: memref<8x128xf32, #tpu.memory_space<vmem>>) attributes {dimension_semantics = [], scalar_prefetch = 0 : i64, scratch_operands = 1 : i64, tpu.core_type = #tpu.core_type<tc>} {
    %c0 = arith.constant 0 : index
    %c0_0 = arith.constant 0 : index
    %0 = vector.load %arg0[%c0, %c0_0] : memref<64x32xf32, #tpu.memory_space<vmem>>, vector<64x32xf32>
    %c0_1 = arith.constant 0 : index
    %c0_2 = arith.constant 0 : index
    %1 = vector.load %arg1[%c0_1, %c0_2] : memref<32x256xf32, #tpu.memory_space<vmem>>, vector<32x256xf32>
    %cst = arith.constant dense<0.000000e+00> : vector<64x256xf32>
    %2 = tpu.matmul %0, %1, %cst {dimension_numbers = #tpu.dot_dimension_numbers<[1], [0], [0], [1], [0, 0, 1, 1], [], []>} : vector<64x32xf32>, vector<32x256xf32>, vector<64x256xf32> -> vector<64x256xf32>
    %c0_3 = arith.constant 0 : index
    %c0_4 = arith.constant 0 : index
    %3 = vector.load %arg3[%c0_3, %c0_4] : memref<1x256xf32, #tpu.memory_space<vmem>>, vector<1x256xf32>
    %4 = vector.broadcast %3 : vector<1x256xf32> to vector<64x256xf32>
    %5 = arith.addf %2, %4 : vector<64x256xf32>
    %c0_5 = arith.constant 0 : index
    %c0_6 = arith.constant 0 : index
    %6 = vector.load %arg2[%c0_5, %c0_6] : memref<64x256xf32, #tpu.memory_space<vmem>>, vector<64x256xf32>
    %c0_7 = arith.constant 0 : index
    %c0_8 = arith.constant 0 : index
    %7 = vector.load %arg4[%c0_7, %c0_8] : memref<128x256xf32, #tpu.memory_space<vmem>>, vector<128x256xf32>
    %c0_9 = arith.constant 0 : index
    %c0_10 = arith.constant 0 : index
    %8 = vector.load %arg5[%c0_9, %c0_10] : memref<1x256xf32, #tpu.memory_space<vmem>>, vector<1x256xf32>
    %9 = vector.shape_cast %8 : vector<1x256xf32> to vector<1x256xf32>
    %10 = vector.broadcast %9 : vector<1x256xf32> to vector<8x256xf32>
    %cst_11 = arith.constant 0.000000e+00 : f32
    %11 = vector.broadcast %cst_11 : f32 to vector<8x128xf32>
    %c0_12 = arith.constant 0 : index
    %c0_13 = arith.constant 0 : index
    %12 = vector.load %arg10[%c0_12, %c0_13] : memref<8x128xf32, #tpu.memory_space<vmem>>, vector<8x128xf32>
    tpu.vector_store %arg10[%c0_12, %c0_13], %11 {strides = array<i32>} : memref<8x128xf32, #tpu.memory_space<vmem>>, vector<8x128xf32>,
    %cst_14 = arith.constant 0.000000e+00 : f32
    %13 = vector.broadcast %cst_14 : f32 to vector<8x64xf32>
    %cst_15 = arith.constant 0.000000e+00 : f32
    %14 = vector.broadcast %cst_15 : f32 to vector<8x64xf32>
    %cst_16 = arith.constant 0.000000e+00 : f32
    %15 = vector.broadcast %cst_16 : f32 to vector<8x64xf32>
    %16 = vector.extract_strided_slice %5 {offsets = [0, 0], sizes = [8, 256], strides = [1, 1]} : vector<64x256xf32> to vector<8x256xf32>
    %cst_17 = arith.constant dense<0.000000e+00> : vector<8x256xf32>
    %17 = tpu.matmul %13, %6, %cst_17 {dimension_numbers = #tpu.dot_dimension_numbers<[1], [0], [0], [1], [0, 0, 1, 1], [], []>} : vector<8x64xf32>, vector<64x256xf32>, vector<8x256xf32> -> vector<8x256xf32>
    %18 = arith.addf %16, %17 : vector<8x256xf32>
    %19 = vector.extract_strided_slice %18 {offsets = [0, 0], sizes = [8, 64], strides = [1, 1]} : vector<8x256xf32> to vector<8x64xf32>
    %20 = arith.negf %19 : vector<8x64xf32>
    %21 = math.exp %20 : vector<8x64xf32>
    %cst_18 = arith.constant 1.000000e+00 : f32
    %22 = vector.broadcast %cst_18 : f32 to vector<8x64xf32>
    %23 = arith.addf %22, %21 : vector<8x64xf32>
    %24 = arith.divf %22, %23 : vector<8x64xf32>
    %25 = vector.extract_strided_slice %18 {offsets = [0, 64], sizes = [8, 64], strides = [1, 1]} : vector<8x256xf32> to vector<8x64xf32>
    %26 = arith.negf %25 : vector<8x64xf32>
    %27 = math.exp %26 : vector<8x64xf32>
    %cst_19 = arith.constant 1.000000e+00 : f32
    %28 = vector.broadcast %cst_19 : f32 to vector<8x64xf32>
    %29 = arith.addf %28, %27 : vector<8x64xf32>
    %30 = arith.divf %28, %29 : vector<8x64xf32>
    %31 = vector.extract_strided_slice %18 {offsets = [0, 128], sizes = [8, 64], strides = [1, 1]} : vector<8x256xf32> to vector<8x64xf32>
    %32 = math.tanh %31 : vector<8x64xf32>
    %33 = vector.extract_strided_slice %18 {offsets = [0, 192], sizes = [8, 64], strides = [1, 1]} : vector<8x256xf32> to vector<8x64xf32>
    %34 = arith.negf %33 : vector<8x64xf32>
    %35 = math.exp %34 : vector<8x64xf32>
    %cst_20 = arith.constant 1.000000e+00 : f32
    %36 = vector.broadcast %cst_20 : f32 to vector<8x64xf32>
    %37 = arith.addf %36, %35 : vector<8x64xf32>
    %38 = arith.divf %36, %37 : vector<8x64xf32>
    %39 = arith.mulf %30, %14 : vector<8x64xf32>
    %40 = arith.mulf %24, %32 : vector<8x64xf32>
    %41 = arith.addf %39, %40 : vector<8x64xf32>
    %42 = math.tanh %41 : vector<8x64xf32>
    %43 = arith.mulf %38, %42 : vector<8x64xf32>
    %c0_21 = arith.constant 0 : index
    %c0_22 = arith.constant 0 : index
    %44 = vector.load %arg10[%c0_21, %c0_22] : memref<8x128xf32, #tpu.memory_space<vmem>>, vector<8x64xf32>
    tpu.vector_store %arg10[%c0_21, %c0_22], %43 {strides = array<i32>} : memref<8x128xf32, #tpu.memory_space<vmem>>, vector<8x64xf32>,
    %c0_23 = arith.constant 0 : index
    %c0_24 = arith.constant 0 : index
    %45 = vector.load %arg10[%c0_23, %c0_24] : memref<8x128xf32, #tpu.memory_space<vmem>>, vector<8x128xf32>
    %cst_25 = arith.constant dense<0.000000e+00> : vector<8x256xf32>
    %46 = tpu.matmul %45, %7, %cst_25 {dimension_numbers = #tpu.dot_dimension_numbers<[1], [0], [0], [1], [0, 0, 1, 1], [], []>} : vector<8x128xf32>, vector<128x256xf32>, vector<8x256xf32> -> vector<8x256xf32>
    %47 = arith.addf %46, %10 : vector<8x256xf32>
    %48 = vector.extract_strided_slice %47 {offsets = [0, 0], sizes = [8, 64], strides = [1, 1]} : vector<8x256xf32> to vector<8x64xf32>
    %49 = arith.negf %48 : vector<8x64xf32>
    %50 = math.exp %49 : vector<8x64xf32>
    %cst_26 = arith.constant 1.000000e+00 : f32
    %51 = vector.broadcast %cst_26 : f32 to vector<8x64xf32>
    %52 = arith.addf %51, %50 : vector<8x64xf32>
    %53 = arith.divf %51, %52 : vector<8x64xf32>
    %54 = vector.extract_strided_slice %47 {offsets = [0, 64], sizes = [8, 64], strides = [1, 1]} : vector<8x256xf32> to vector<8x64xf32>
    %55 = arith.negf %54 : vector<8x64xf32>
    %56 = math.exp %55 : vector<8x64xf32>
    %cst_27 = arith.constant 1.000000e+00 : f32
    %57 = vector.broadcast %cst_27 : f32 to vector<8x64xf32>
    %58 = arith.addf %57, %56 : vector<8x64xf32>
    %59 = arith.divf %57, %58 : vector<8x64xf32>
    %60 = vector.extract_strided_slice %47 {offsets = [0, 128], sizes = [8, 64], strides = [1, 1]} : vector<8x256xf32> to vector<8x64xf32>
    %61 = math.tanh %60 : vector<8x64xf32>
    %62 = vector.extract_strided_slice %47 {offsets = [0, 192], sizes = [8, 64], strides = [1, 1]} : vector<8x256xf32> to vector<8x64xf32>
    %63 = arith.negf %62 : vector<8x64xf32>
    %64 = math.exp %63 : vector<8x64xf32>
    %cst_28 = arith.constant 1.000000e+00 : f32
    %65 = vector.broadcast %cst_28 : f32 to vector<8x64xf32>
    %66 = arith.addf %65, %64 : vector<8x64xf32>
    %67 = arith.divf %65, %66 : vector<8x64xf32>
    %68 = arith.mulf %59, %15 : vector<8x64xf32>
    %69 = arith.mulf %53, %61 : vector<8x64xf32>
    %70 = arith.addf %68, %69 : vector<8x64xf32>
    %71 = math.tanh %70 : vector<8x64xf32>
    %72 = arith.mulf %67, %71 : vector<8x64xf32>
    %c0_29 = arith.constant 0 : index
    %c64 = arith.constant 64 : index
    %73 = vector.load %arg10[%c0_29, %c64] : memref<8x128xf32, #tpu.memory_space<vmem>>, vector<8x64xf32>
    tpu.vector_store %arg10[%c0_29, %c64], %72 {strides = array<i32>} : memref<8x128xf32, #tpu.memory_space<vmem>>, vector<8x64xf32>,
    %c0_30 = arith.constant 0 : index
    %c0_31 = arith.constant 0 : index
    %74 = vector.load %arg8[%c0_30, %c0_31] : memref<8x512xf32, #tpu.memory_space<vmem>>, vector<8x64xf32>
    tpu.vector_store %arg8[%c0_30, %c0_31], %72 {strides = array<i32>} : memref<8x512xf32, #tpu.memory_space<vmem>>, vector<8x64xf32>,
    %75 = vector.extract_strided_slice %5 {offsets = [8, 0], sizes = [8, 256], strides = [1, 1]} : vector<64x256xf32> to vector<8x256xf32>
    %cst_32 = arith.constant dense<0.000000e+00> : vector<8x256xf32>
    %76 = tpu.matmul %43, %6, %cst_32 {dimension_numbers = #tpu.dot_dimension_numbers<[1], [0], [0], [1], [0, 0, 1, 1], [], []>} : vector<8x64xf32>, vector<64x256xf32>, vector<8x256xf32> -> vector<8x256xf32>
    %77 = arith.addf %75, %76 : vector<8x256xf32>
    %78 = vector.extract_strided_slice %77 {offsets = [0, 0], sizes = [8, 64], strides = [1, 1]} : vector<8x256xf32> to vector<8x64xf32>
    %79 = arith.negf %78 : vector<8x64xf32>
    %80 = math.exp %79 : vector<8x64xf32>
    %cst_33 = arith.constant 1.000000e+00 : f32
    %81 = vector.broadcast %cst_33 : f32 to vector<8x64xf32>
    %82 = arith.addf %81, %80 : vector<8x64xf32>
    %83 = arith.divf %81, %82 : vector<8x64xf32>
    %84 = vector.extract_strided_slice %77 {offsets = [0, 64], sizes = [8, 64], strides = [1, 1]} : vector<8x256xf32> to vector<8x64xf32>
    %85 = arith.negf %84 : vector<8x64xf32>
    %86 = math.exp %85 : vector<8x64xf32>
    %cst_34 = arith.constant 1.000000e+00 : f32
    %87 = vector.broadcast %cst_34 : f32 to vector<8x64xf32>
    %88 = arith.addf %87, %86 : vector<8x64xf32>
    %89 = arith.divf %87, %88 : vector<8x64xf32>
    %90 = vector.extract_strided_slice %77 {offsets = [0, 128], sizes = [8, 64], strides = [1, 1]} : vector<8x256xf32> to vector<8x64xf32>
    %91 = math.tanh %90 : vector<8x64xf32>
    %92 = vector.extract_strided_slice %77 {offsets = [0, 192], sizes = [8, 64], strides = [1, 1]} : vector<8x256xf32> to vector<8x64xf32>
    %93 = arith.negf %92 : vector<8x64xf32>
    %94 = math.exp %93 : vector<8x64xf32>
    %cst_35 = arith.constant 1.000000e+00 : f32
    %95 = vector.broadcast %cst_35 : f32 to vector<8x64xf32>
    %96 = arith.addf %95, %94 : vector<8x64xf32>
    %97 = arith.divf %95, %96 : vector<8x64xf32>
    %98 = arith.mulf %89, %41 : vector<8x64xf32>
    %99 = arith.mulf %83, %91 : vector<8x64xf32>
    %100 = arith.addf %98, %99 : vector<8x64xf32>
    %101 = math.tanh %100 : vector<8x64xf32>
    %102 = arith.mulf %97, %101 : vector<8x64xf32>
    %c0_36 = arith.constant 0 : index
    %c0_37 = arith.constant 0 : index
    %103 = vector.load %arg10[%c0_36, %c0_37] : memref<8x128xf32, #tpu.memory_space<vmem>>, vector<8x64xf32>
    tpu.vector_store %arg10[%c0_36, %c0_37], %102 {strides = array<i32>} : memref<8x128xf32, #tpu.memory_space<vmem>>, vector<8x64xf32>,
    %c0_38 = arith.constant 0 : index
    %c0_39 = arith.constant 0 : index
    %104 = vector.load %arg10[%c0_38, %c0_39] : memref<8x128xf32, #tpu.memory_space<vmem>>, vector<8x128xf32>
    %cst_40 = arith.constant dense<0.000000e+00> : vector<8x256xf32>
    %105 = tpu.matmul %104, %7, %cst_40 {dimension_numbers = #tpu.dot_dimension_numbers<[1], [0], [0], [1], [0, 0, 1, 1], [], []>} : vector<8x128xf32>, vector<128x256xf32>, vector<8x256xf32> -> vector<8x256xf32>
    %106 = arith.addf %105, %10 : vector<8x256xf32>
    %107 = vector.extract_strided_slice %106 {offsets = [0, 0], sizes = [8, 64], strides = [1, 1]} : vector<8x256xf32> to vector<8x64xf32>
    %108 = arith.negf %107 : vector<8x64xf32>
    %109 = math.exp %108 : vector<8x64xf32>
    %cst_41 = arith.constant 1.000000e+00 : f32
    %110 = vector.broadcast %cst_41 : f32 to vector<8x64xf32>
    %111 = arith.addf %110, %109 : vector<8x64xf32>
    %112 = arith.divf %110, %111 : vector<8x64xf32>
    %113 = vector.extract_strided_slice %106 {offsets = [0, 64], sizes = [8, 64], strides = [1, 1]} : vector<8x256xf32> to vector<8x64xf32>
    %114 = arith.negf %113 : vector<8x64xf32>
    %115 = math.exp %114 : vector<8x64xf32>
    %cst_42 = arith.constant 1.000000e+00 : f32
    %116 = vector.broadcast %cst_42 : f32 to vector<8x64xf32>
    %117 = arith.addf %116, %115 : vector<8x64xf32>
    %118 = arith.divf %116, %117 : vector<8x64xf32>
    %119 = vector.extract_strided_slice %106 {offsets = [0, 128], sizes = [8, 64], strides = [1, 1]} : vector<8x256xf32> to vector<8x64xf32>
    %120 = math.tanh %119 : vector<8x64xf32>
    %121 = vector.extract_strided_slice %106 {offsets = [0, 192], sizes = [8, 64], strides = [1, 1]} : vector<8x256xf32> to vector<8x64xf32>
    %122 = arith.negf %121 : vector<8x64xf32>
    %123 = math.exp %122 : vector<8x64xf32>
    %cst_43 = arith.constant 1.000000e+00 : f32
    %124 = vector.broadcast %cst_43 : f32 to vector<8x64xf32>
    %125 = arith.addf %124, %123 : vector<8x64xf32>
    %126 = arith.divf %124, %125 : vector<8x64xf32>
    %127 = arith.mulf %118, %70 : vector<8x64xf32>
    %128 = arith.mulf %112, %120 : vector<8x64xf32>
    %129 = arith.addf %127, %128 : vector<8x64xf32>
    %130 = math.tanh %129 : vector<8x64xf32>
    %131 = arith.mulf %126, %130 : vector<8x64xf32>
    %c0_44 = arith.constant 0 : index
    %c64_45 = arith.constant 64 : index
    %132 = vector.load %arg10[%c0_44, %c64_45] : memref<8x128xf32, #tpu.memory_space<vmem>>, vector<8x64xf32>
    tpu.vector_store %arg10[%c0_44, %c64_45], %131 {strides = array<i32>} : memref<8x128xf32, #tpu.memory_space<vmem>>, vector<8x64xf32>,
    %c0_46 = arith.constant 0 : index
    %c64_47 = arith.constant 64 : index
    %133 = vector.load %arg8[%c0_46, %c64_47] : memref<8x512xf32, #tpu.memory_space<vmem>>, vector<8x64xf32>
    tpu.vector_store %arg8[%c0_46, %c64_47], %131 {strides = array<i32>} : memref<8x512xf32, #tpu.memory_space<vmem>>, vector<8x64xf32>,
    %134 = vector.extract_strided_slice %5 {offsets = [16, 0], sizes = [8, 256], strides = [1, 1]} : vector<64x256xf32> to vector<8x256xf32>
    %cst_48 = arith.constant dense<0.000000e+00> : vector<8x256xf32>
    %135 = tpu.matmul %102, %6, %cst_48 {dimension_numbers = #tpu.dot_dimension_numbers<[1], [0], [0], [1], [0, 0, 1, 1], [], []>} : vector<8x64xf32>, vector<64x256xf32>, vector<8x256xf32> -> vector<8x256xf32>
    %136 = arith.addf %134, %135 : vector<8x256xf32>
    %137 = vector.extract_strided_slice %136 {offsets = [0, 0], sizes = [8, 64], strides = [1, 1]} : vector<8x256xf32> to vector<8x64xf32>
    %138 = arith.negf %137 : vector<8x64xf32>
    %139 = math.exp %138 : vector<8x64xf32>
    %cst_49 = arith.constant 1.000000e+00 : f32
    %140 = vector.broadcast %cst_49 : f32 to vector<8x64xf32>
    %141 = arith.addf %140, %139 : vector<8x64xf32>
    %142 = arith.divf %140, %141 : vector<8x64xf32>
    %143 = vector.extract_strided_slice %136 {offsets = [0, 64], sizes = [8, 64], strides = [1, 1]} : vector<8x256xf32> to vector<8x64xf32>
    %144 = arith.negf %143 : vector<8x64xf32>
    %145 = math.exp %144 : vector<8x64xf32>
    %cst_50 = arith.constant 1.000000e+00 : f32
    %146 = vector.broadcast %cst_50 : f32 to vector<8x64xf32>
    %147 = arith.addf %146, %145 : vector<8x64xf32>
    %148 = arith.divf %146, %147 : vector<8x64xf32>
    %149 = vector.extract_strided_slice %136 {offsets = [0, 128], sizes = [8, 64], strides = [1, 1]} : vector<8x256xf32> to vector<8x64xf32>
    %150 = math.tanh %149 : vector<8x64xf32>
    %151 = vector.extract_strided_slice %136 {offsets = [0, 192], sizes = [8, 64], strides = [1, 1]} : vector<8x256xf32> to vector<8x64xf32>
    %152 = arith.negf %151 : vector<8x64xf32>
    %153 = math.exp %152 : vector<8x64xf32>
    %cst_51 = arith.constant 1.000000e+00 : f32
    %154 = vector.broadcast %cst_51 : f32 to vector<8x64xf32>
    %155 = arith.addf %154, %153 : vector<8x64xf32>
    %156 = arith.divf %154, %155 : vector<8x64xf32>
    %157 = arith.mulf %148, %100 : vector<8x64xf32>
    %158 = arith.mulf %142, %150 : vector<8x64xf32>
    %159 = arith.addf %157, %158 : vector<8x64xf32>
    %160 = math.tanh %159 : vector<8x64xf32>
    %161 = arith.mulf %156, %160 : vector<8x64xf32>
    %c0_52 = arith.constant 0 : index
    %c0_53 = arith.constant 0 : index
    %162 = vector.load %arg10[%c0_52, %c0_53] : memref<8x128xf32, #tpu.memory_space<vmem>>, vector<8x64xf32>
    tpu.vector_store %arg10[%c0_52, %c0_53], %161 {strides = array<i32>} : memref<8x128xf32, #tpu.memory_space<vmem>>, vector<8x64xf32>,
    %c0_54 = arith.constant 0 : index
    %c0_55 = arith.constant 0 : index
    %163 = vector.load %arg10[%c0_54, %c0_55] : memref<8x128xf32, #tpu.memory_space<vmem>>, vector<8x128xf32>
    %cst_56 = arith.constant dense<0.000000e+00> : vector<8x256xf32>
    %164 = tpu.matmul %163, %7, %cst_56 {dimension_numbers = #tpu.dot_dimension_numbers<[1], [0], [0], [1], [0, 0, 1, 1], [], []>} : vector<8x128xf32>, vector<128x256xf32>, vector<8x256xf32> -> vector<8x256xf32>
    %165 = arith.addf %164, %10 : vector<8x256xf32>
    %166 = vector.extract_strided_slice %165 {offsets = [0, 0], sizes = [8, 64], strides = [1, 1]} : vector<8x256xf32> to vector<8x64xf32>
    %167 = arith.negf %166 : vector<8x64xf32>
    %168 = math.exp %167 : vector<8x64xf32>
    %cst_57 = arith.constant 1.000000e+00 : f32
    %169 = vector.broadcast %cst_57 : f32 to vector<8x64xf32>
    %170 = arith.addf %169, %168 : vector<8x64xf32>
    %171 = arith.divf %169, %170 : vector<8x64xf32>
    %172 = vector.extract_strided_slice %165 {offsets = [0, 64], sizes = [8, 64], strides = [1, 1]} : vector<8x256xf32> to vector<8x64xf32>
    %173 = arith.negf %172 : vector<8x64xf32>
    %174 = math.exp %173 : vector<8x64xf32>
    %cst_58 = arith.constant 1.000000e+00 : f32
    %175 = vector.broadcast %cst_58 : f32 to vector<8x64xf32>
    %176 = arith.addf %175, %174 : vector<8x64xf32>
    %177 = arith.divf %175, %176 : vector<8x64xf32>
    %178 = vector.extract_strided_slice %165 {offsets = [0, 128], sizes = [8, 64], strides = [1, 1]} : vector<8x256xf32> to vector<8x64xf32>
    %179 = math.tanh %178 : vector<8x64xf32>
    %180 = vector.extract_strided_slice %165 {offsets = [0, 192], sizes = [8, 64], strides = [1, 1]} : vector<8x256xf32> to vector<8x64xf32>
    %181 = arith.negf %180 : vector<8x64xf32>
    %182 = math.exp %181 : vector<8x64xf32>
    %cst_59 = arith.constant 1.000000e+00 : f32
    %183 = vector.broadcast %cst_59 : f32 to vector<8x64xf32>
    %184 = arith.addf %183, %182 : vector<8x64xf32>
    %185 = arith.divf %183, %184 : vector<8x64xf32>
    %186 = arith.mulf %177, %129 : vector<8x64xf32>
    %187 = arith.mulf %171, %179 : vector<8x64xf32>
    %188 = arith.addf %186, %187 : vector<8x64xf32>
    %189 = math.tanh %188 : vector<8x64xf32>
    %190 = arith.mulf %185, %189 : vector<8x64xf32>
    %c0_60 = arith.constant 0 : index
    %c64_61 = arith.constant 64 : index
    %191 = vector.load %arg10[%c0_60, %c64_61] : memref<8x128xf32, #tpu.memory_space<vmem>>, vector<8x64xf32>
    tpu.vector_store %arg10[%c0_60, %c64_61], %190 {strides = array<i32>} : memref<8x128xf32, #tpu.memory_space<vmem>>, vector<8x64xf32>,
    %c0_62 = arith.constant 0 : index
    %c128 = arith.constant 128 : index
    %192 = vector.load %arg8[%c0_62, %c128] : memref<8x512xf32, #tpu.memory_space<vmem>>, vector<8x64xf32>
    tpu.vector_store %arg8[%c0_62, %c128], %190 {strides = array<i32>} : memref<8x512xf32, #tpu.memory_space<vmem>>, vector<8x64xf32>,
    %193 = vector.extract_strided_slice %5 {offsets = [24, 0], sizes = [8, 256], strides = [1, 1]} : vector<64x256xf32> to vector<8x256xf32>
    %cst_63 = arith.constant dense<0.000000e+00> : vector<8x256xf32>
    %194 = tpu.matmul %161, %6, %cst_63 {dimension_numbers = #tpu.dot_dimension_numbers<[1], [0], [0], [1], [0, 0, 1, 1], [], []>} : vector<8x64xf32>, vector<64x256xf32>, vector<8x256xf32> -> vector<8x256xf32>
    %195 = arith.addf %193, %194 : vector<8x256xf32>
    %196 = vector.extract_strided_slice %195 {offsets = [0, 0], sizes = [8, 64], strides = [1, 1]} : vector<8x256xf32> to vector<8x64xf32>
    %197 = arith.negf %196 : vector<8x64xf32>
    %198 = math.exp %197 : vector<8x64xf32>
    %cst_64 = arith.constant 1.000000e+00 : f32
    %199 = vector.broadcast %cst_64 : f32 to vector<8x64xf32>
    %200 = arith.addf %199, %198 : vector<8x64xf32>
    %201 = arith.divf %199, %200 : vector<8x64xf32>
    %202 = vector.extract_strided_slice %195 {offsets = [0, 64], sizes = [8, 64], strides = [1, 1]} : vector<8x256xf32> to vector<8x64xf32>
    %203 = arith.negf %202 : vector<8x64xf32>
    %204 = math.exp %203 : vector<8x64xf32>
    %cst_65 = arith.constant 1.000000e+00 : f32
    %205 = vector.broadcast %cst_65 : f32 to vector<8x64xf32>
    %206 = arith.addf %205, %204 : vector<8x64xf32>
    %207 = arith.divf %205, %206 : vector<8x64xf32>
    %208 = vector.extract_strided_slice %195 {offsets = [0, 128], sizes = [8, 64], strides = [1, 1]} : vector<8x256xf32> to vector<8x64xf32>
    %209 = math.tanh %208 : vector<8x64xf32>
    %210 = vector.extract_strided_slice %195 {offsets = [0, 192], sizes = [8, 64], strides = [1, 1]} : vector<8x256xf32> to vector<8x64xf32>
    %211 = arith.negf %210 : vector<8x64xf32>
    %212 = math.exp %211 : vector<8x64xf32>
    %cst_66 = arith.constant 1.000000e+00 : f32
    %213 = vector.broadcast %cst_66 : f32 to vector<8x64xf32>
    %214 = arith.addf %213, %212 : vector<8x64xf32>
    %215 = arith.divf %213, %214 : vector<8x64xf32>
    %216 = arith.mulf %207, %159 : vector<8x64xf32>
    %217 = arith.mulf %201, %209 : vector<8x64xf32>
    %218 = arith.addf %216, %217 : vector<8x64xf32>
    %219 = math.tanh %218 : vector<8x64xf32>
    %220 = arith.mulf %215, %219 : vector<8x64xf32>
    %c0_67 = arith.constant 0 : index
    %c0_68 = arith.constant 0 : index
    %221 = vector.load %arg10[%c0_67, %c0_68] : memref<8x128xf32, #tpu.memory_space<vmem>>, vector<8x64xf32>
    tpu.vector_store %arg10[%c0_67, %c0_68], %220 {strides = array<i32>} : memref<8x128xf32, #tpu.memory_space<vmem>>, vector<8x64xf32>,
    %c0_69 = arith.constant 0 : index
    %c0_70 = arith.constant 0 : index
    %222 = vector.load %arg10[%c0_69, %c0_70] : memref<8x128xf32, #tpu.memory_space<vmem>>, vector<8x128xf32>
    %cst_71 = arith.constant dense<0.000000e+00> : vector<8x256xf32>
    %223 = tpu.matmul %222, %7, %cst_71 {dimension_numbers = #tpu.dot_dimension_numbers<[1], [0], [0], [1], [0, 0, 1, 1], [], []>} : vector<8x128xf32>, vector<128x256xf32>, vector<8x256xf32> -> vector<8x256xf32>
    %224 = arith.addf %223, %10 : vector<8x256xf32>
    %225 = vector.extract_strided_slice %224 {offsets = [0, 0], sizes = [8, 64], strides = [1, 1]} : vector<8x256xf32> to vector<8x64xf32>
    %226 = arith.negf %225 : vector<8x64xf32>
    %227 = math.exp %226 : vector<8x64xf32>
    %cst_72 = arith.constant 1.000000e+00 : f32
    %228 = vector.broadcast %cst_72 : f32 to vector<8x64xf32>
    %229 = arith.addf %228, %227 : vector<8x64xf32>
    %230 = arith.divf %228, %229 : vector<8x64xf32>
    %231 = vector.extract_strided_slice %224 {offsets = [0, 64], sizes = [8, 64], strides = [1, 1]} : vector<8x256xf32> to vector<8x64xf32>
    %232 = arith.negf %231 : vector<8x64xf32>
    %233 = math.exp %232 : vector<8x64xf32>
    %cst_73 = arith.constant 1.000000e+00 : f32
    %234 = vector.broadcast %cst_73 : f32 to vector<8x64xf32>
    %235 = arith.addf %234, %233 : vector<8x64xf32>
    %236 = arith.divf %234, %235 : vector<8x64xf32>
    %237 = vector.extract_strided_slice %224 {offsets = [0, 128], sizes = [8, 64], strides = [1, 1]} : vector<8x256xf32> to vector<8x64xf32>
    %238 = math.tanh %237 : vector<8x64xf32>
    %239 = vector.extract_strided_slice %224 {offsets = [0, 192], sizes = [8, 64], strides = [1, 1]} : vector<8x256xf32> to vector<8x64xf32>
    %240 = arith.negf %239 : vector<8x64xf32>
    %241 = math.exp %240 : vector<8x64xf32>
    %cst_74 = arith.constant 1.000000e+00 : f32
    %242 = vector.broadcast %cst_74 : f32 to vector<8x64xf32>
    %243 = arith.addf %242, %241 : vector<8x64xf32>
    %244 = arith.divf %242, %243 : vector<8x64xf32>
    %245 = arith.mulf %236, %188 : vector<8x64xf32>
    %246 = arith.mulf %230, %238 : vector<8x64xf32>
    %247 = arith.addf %245, %246 : vector<8x64xf32>
    %248 = math.tanh %247 : vector<8x64xf32>
    %249 = arith.mulf %244, %248 : vector<8x64xf32>
    %c0_75 = arith.constant 0 : index
    %c64_76 = arith.constant 64 : index
    %250 = vector.load %arg10[%c0_75, %c64_76] : memref<8x128xf32, #tpu.memory_space<vmem>>, vector<8x64xf32>
    tpu.vector_store %arg10[%c0_75, %c64_76], %249 {strides = array<i32>} : memref<8x128xf32, #tpu.memory_space<vmem>>, vector<8x64xf32>,
    %c0_77 = arith.constant 0 : index
    %c192 = arith.constant 192 : index
    %251 = vector.load %arg8[%c0_77, %c192] : memref<8x512xf32, #tpu.memory_space<vmem>>, vector<8x64xf32>
    tpu.vector_store %arg8[%c0_77, %c192], %249 {strides = array<i32>} : memref<8x512xf32, #tpu.memory_space<vmem>>, vector<8x64xf32>,
    %252 = vector.extract_strided_slice %5 {offsets = [32, 0], sizes = [8, 256], strides = [1, 1]} : vector<64x256xf32> to vector<8x256xf32>
    %cst_78 = arith.constant dense<0.000000e+00> : vector<8x256xf32>
    %253 = tpu.matmul %220, %6, %cst_78 {dimension_numbers = #tpu.dot_dimension_numbers<[1], [0], [0], [1], [0, 0, 1, 1], [], []>} : vector<8x64xf32>, vector<64x256xf32>, vector<8x256xf32> -> vector<8x256xf32>
    %254 = arith.addf %252, %253 : vector<8x256xf32>
    %255 = vector.extract_strided_slice %254 {offsets = [0, 0], sizes = [8, 64], strides = [1, 1]} : vector<8x256xf32> to vector<8x64xf32>
    %256 = arith.negf %255 : vector<8x64xf32>
    %257 = math.exp %256 : vector<8x64xf32>
    %cst_79 = arith.constant 1.000000e+00 : f32
    %258 = vector.broadcast %cst_79 : f32 to vector<8x64xf32>
    %259 = arith.addf %258, %257 : vector<8x64xf32>
    %260 = arith.divf %258, %259 : vector<8x64xf32>
    %261 = vector.extract_strided_slice %254 {offsets = [0, 64], sizes = [8, 64], strides = [1, 1]} : vector<8x256xf32> to vector<8x64xf32>
    %262 = arith.negf %261 : vector<8x64xf32>
    %263 = math.exp %262 : vector<8x64xf32>
    %cst_80 = arith.constant 1.000000e+00 : f32
    %264 = vector.broadcast %cst_80 : f32 to vector<8x64xf32>
    %265 = arith.addf %264, %263 : vector<8x64xf32>
    %266 = arith.divf %264, %265 : vector<8x64xf32>
    %267 = vector.extract_strided_slice %254 {offsets = [0, 128], sizes = [8, 64], strides = [1, 1]} : vector<8x256xf32> to vector<8x64xf32>
    %268 = math.tanh %267 : vector<8x64xf32>
    %269 = vector.extract_strided_slice %254 {offsets = [0, 192], sizes = [8, 64], strides = [1, 1]} : vector<8x256xf32> to vector<8x64xf32>
    %270 = arith.negf %269 : vector<8x64xf32>
    %271 = math.exp %270 : vector<8x64xf32>
    %cst_81 = arith.constant 1.000000e+00 : f32
    %272 = vector.broadcast %cst_81 : f32 to vector<8x64xf32>
    %273 = arith.addf %272, %271 : vector<8x64xf32>
    %274 = arith.divf %272, %273 : vector<8x64xf32>
    %275 = arith.mulf %266, %218 : vector<8x64xf32>
    %276 = arith.mulf %260, %268 : vector<8x64xf32>
    %277 = arith.addf %275, %276 : vector<8x64xf32>
    %278 = math.tanh %277 : vector<8x64xf32>
    %279 = arith.mulf %274, %278 : vector<8x64xf32>
    %c0_82 = arith.constant 0 : index
    %c0_83 = arith.constant 0 : index
    %280 = vector.load %arg10[%c0_82, %c0_83] : memref<8x128xf32, #tpu.memory_space<vmem>>, vector<8x64xf32>
    tpu.vector_store %arg10[%c0_82, %c0_83], %279 {strides = array<i32>} : memref<8x128xf32, #tpu.memory_space<vmem>>, vector<8x64xf32>,
    %c0_84 = arith.constant 0 : index
    %c0_85 = arith.constant 0 : index
    %281 = vector.load %arg10[%c0_84, %c0_85] : memref<8x128xf32, #tpu.memory_space<vmem>>, vector<8x128xf32>
    %cst_86 = arith.constant dense<0.000000e+00> : vector<8x256xf32>
    %282 = tpu.matmul %281, %7, %cst_86 {dimension_numbers = #tpu.dot_dimension_numbers<[1], [0], [0], [1], [0, 0, 1, 1], [], []>} : vector<8x128xf32>, vector<128x256xf32>, vector<8x256xf32> -> vector<8x256xf32>
    %283 = arith.addf %282, %10 : vector<8x256xf32>
    %284 = vector.extract_strided_slice %283 {offsets = [0, 0], sizes = [8, 64], strides = [1, 1]} : vector<8x256xf32> to vector<8x64xf32>
    %285 = arith.negf %284 : vector<8x64xf32>
    %286 = math.exp %285 : vector<8x64xf32>
    %cst_87 = arith.constant 1.000000e+00 : f32
    %287 = vector.broadcast %cst_87 : f32 to vector<8x64xf32>
    %288 = arith.addf %287, %286 : vector<8x64xf32>
    %289 = arith.divf %287, %288 : vector<8x64xf32>
    %290 = vector.extract_strided_slice %283 {offsets = [0, 64], sizes = [8, 64], strides = [1, 1]} : vector<8x256xf32> to vector<8x64xf32>
    %291 = arith.negf %290 : vector<8x64xf32>
    %292 = math.exp %291 : vector<8x64xf32>
    %cst_88 = arith.constant 1.000000e+00 : f32
    %293 = vector.broadcast %cst_88 : f32 to vector<8x64xf32>
    %294 = arith.addf %293, %292 : vector<8x64xf32>
    %295 = arith.divf %293, %294 : vector<8x64xf32>
    %296 = vector.extract_strided_slice %283 {offsets = [0, 128], sizes = [8, 64], strides = [1, 1]} : vector<8x256xf32> to vector<8x64xf32>
    %297 = math.tanh %296 : vector<8x64xf32>
    %298 = vector.extract_strided_slice %283 {offsets = [0, 192], sizes = [8, 64], strides = [1, 1]} : vector<8x256xf32> to vector<8x64xf32>
    %299 = arith.negf %298 : vector<8x64xf32>
    %300 = math.exp %299 : vector<8x64xf32>
    %cst_89 = arith.constant 1.000000e+00 : f32
    %301 = vector.broadcast %cst_89 : f32 to vector<8x64xf32>
    %302 = arith.addf %301, %300 : vector<8x64xf32>
    %303 = arith.divf %301, %302 : vector<8x64xf32>
    %304 = arith.mulf %295, %247 : vector<8x64xf32>
    %305 = arith.mulf %289, %297 : vector<8x64xf32>
    %306 = arith.addf %304, %305 : vector<8x64xf32>
    %307 = math.tanh %306 : vector<8x64xf32>
    %308 = arith.mulf %303, %307 : vector<8x64xf32>
    %c0_90 = arith.constant 0 : index
    %c64_91 = arith.constant 64 : index
    %309 = vector.load %arg10[%c0_90, %c64_91] : memref<8x128xf32, #tpu.memory_space<vmem>>, vector<8x64xf32>
    tpu.vector_store %arg10[%c0_90, %c64_91], %308 {strides = array<i32>} : memref<8x128xf32, #tpu.memory_space<vmem>>, vector<8x64xf32>,
    %c0_92 = arith.constant 0 : index
    %c256 = arith.constant 256 : index
    %310 = vector.load %arg8[%c0_92, %c256] : memref<8x512xf32, #tpu.memory_space<vmem>>, vector<8x64xf32>
    tpu.vector_store %arg8[%c0_92, %c256], %308 {strides = array<i32>} : memref<8x512xf32, #tpu.memory_space<vmem>>, vector<8x64xf32>,
    %311 = vector.extract_strided_slice %5 {offsets = [40, 0], sizes = [8, 256], strides = [1, 1]} : vector<64x256xf32> to vector<8x256xf32>
    %cst_93 = arith.constant dense<0.000000e+00> : vector<8x256xf32>
    %312 = tpu.matmul %279, %6, %cst_93 {dimension_numbers = #tpu.dot_dimension_numbers<[1], [0], [0], [1], [0, 0, 1, 1], [], []>} : vector<8x64xf32>, vector<64x256xf32>, vector<8x256xf32> -> vector<8x256xf32>
    %313 = arith.addf %311, %312 : vector<8x256xf32>
    %314 = vector.extract_strided_slice %313 {offsets = [0, 0], sizes = [8, 64], strides = [1, 1]} : vector<8x256xf32> to vector<8x64xf32>
    %315 = arith.negf %314 : vector<8x64xf32>
    %316 = math.exp %315 : vector<8x64xf32>
    %cst_94 = arith.constant 1.000000e+00 : f32
    %317 = vector.broadcast %cst_94 : f32 to vector<8x64xf32>
    %318 = arith.addf %317, %316 : vector<8x64xf32>
    %319 = arith.divf %317, %318 : vector<8x64xf32>
    %320 = vector.extract_strided_slice %313 {offsets = [0, 64], sizes = [8, 64], strides = [1, 1]} : vector<8x256xf32> to vector<8x64xf32>
    %321 = arith.negf %320 : vector<8x64xf32>
    %322 = math.exp %321 : vector<8x64xf32>
    %cst_95 = arith.constant 1.000000e+00 : f32
    %323 = vector.broadcast %cst_95 : f32 to vector<8x64xf32>
    %324 = arith.addf %323, %322 : vector<8x64xf32>
    %325 = arith.divf %323, %324 : vector<8x64xf32>
    %326 = vector.extract_strided_slice %313 {offsets = [0, 128], sizes = [8, 64], strides = [1, 1]} : vector<8x256xf32> to vector<8x64xf32>
    %327 = math.tanh %326 : vector<8x64xf32>
    %328 = vector.extract_strided_slice %313 {offsets = [0, 192], sizes = [8, 64], strides = [1, 1]} : vector<8x256xf32> to vector<8x64xf32>
    %329 = arith.negf %328 : vector<8x64xf32>
    %330 = math.exp %329 : vector<8x64xf32>
    %cst_96 = arith.constant 1.000000e+00 : f32
    %331 = vector.broadcast %cst_96 : f32 to vector<8x64xf32>
    %332 = arith.addf %331, %330 : vector<8x64xf32>
    %333 = arith.divf %331, %332 : vector<8x64xf32>
    %334 = arith.mulf %325, %277 : vector<8x64xf32>
    %335 = arith.mulf %319, %327 : vector<8x64xf32>
    %336 = arith.addf %334, %335 : vector<8x64xf32>
    %337 = math.tanh %336 : vector<8x64xf32>
    %338 = arith.mulf %333, %337 : vector<8x64xf32>
    %c0_97 = arith.constant 0 : index
    %c0_98 = arith.constant 0 : index
    %339 = vector.load %arg10[%c0_97, %c0_98] : memref<8x128xf32, #tpu.memory_space<vmem>>, vector<8x64xf32>
    tpu.vector_store %arg10[%c0_97, %c0_98], %338 {strides = array<i32>} : memref<8x128xf32, #tpu.memory_space<vmem>>, vector<8x64xf32>,
    %c0_99 = arith.constant 0 : index
    %c0_100 = arith.constant 0 : index
    %340 = vector.load %arg10[%c0_99, %c0_100] : memref<8x128xf32, #tpu.memory_space<vmem>>, vector<8x128xf32>
    %cst_101 = arith.constant dense<0.000000e+00> : vector<8x256xf32>
    %341 = tpu.matmul %340, %7, %cst_101 {dimension_numbers = #tpu.dot_dimension_numbers<[1], [0], [0], [1], [0, 0, 1, 1], [], []>} : vector<8x128xf32>, vector<128x256xf32>, vector<8x256xf32> -> vector<8x256xf32>
    %342 = arith.addf %341, %10 : vector<8x256xf32>
    %343 = vector.extract_strided_slice %342 {offsets = [0, 0], sizes = [8, 64], strides = [1, 1]} : vector<8x256xf32> to vector<8x64xf32>
    %344 = arith.negf %343 : vector<8x64xf32>
    %345 = math.exp %344 : vector<8x64xf32>
    %cst_102 = arith.constant 1.000000e+00 : f32
    %346 = vector.broadcast %cst_102 : f32 to vector<8x64xf32>
    %347 = arith.addf %346, %345 : vector<8x64xf32>
    %348 = arith.divf %346, %347 : vector<8x64xf32>
    %349 = vector.extract_strided_slice %342 {offsets = [0, 64], sizes = [8, 64], strides = [1, 1]} : vector<8x256xf32> to vector<8x64xf32>
    %350 = arith.negf %349 : vector<8x64xf32>
    %351 = math.exp %350 : vector<8x64xf32>
    %cst_103 = arith.constant 1.000000e+00 : f32
    %352 = vector.broadcast %cst_103 : f32 to vector<8x64xf32>
    %353 = arith.addf %352, %351 : vector<8x64xf32>
    %354 = arith.divf %352, %353 : vector<8x64xf32>
    %355 = vector.extract_strided_slice %342 {offsets = [0, 128], sizes = [8, 64], strides = [1, 1]} : vector<8x256xf32> to vector<8x64xf32>
    %356 = math.tanh %355 : vector<8x64xf32>
    %357 = vector.extract_strided_slice %342 {offsets = [0, 192], sizes = [8, 64], strides = [1, 1]} : vector<8x256xf32> to vector<8x64xf32>
    %358 = arith.negf %357 : vector<8x64xf32>
    %359 = math.exp %358 : vector<8x64xf32>
    %cst_104 = arith.constant 1.000000e+00 : f32
    %360 = vector.broadcast %cst_104 : f32 to vector<8x64xf32>
    %361 = arith.addf %360, %359 : vector<8x64xf32>
    %362 = arith.divf %360, %361 : vector<8x64xf32>
    %363 = arith.mulf %354, %306 : vector<8x64xf32>
    %364 = arith.mulf %348, %356 : vector<8x64xf32>
    %365 = arith.addf %363, %364 : vector<8x64xf32>
    %366 = math.tanh %365 : vector<8x64xf32>
    %367 = arith.mulf %362, %366 : vector<8x64xf32>
    %c0_105 = arith.constant 0 : index
    %c64_106 = arith.constant 64 : index
    %368 = vector.load %arg10[%c0_105, %c64_106] : memref<8x128xf32, #tpu.memory_space<vmem>>, vector<8x64xf32>
    tpu.vector_store %arg10[%c0_105, %c64_106], %367 {strides = array<i32>} : memref<8x128xf32, #tpu.memory_space<vmem>>, vector<8x64xf32>,
    %c0_107 = arith.constant 0 : index
    %c320 = arith.constant 320 : index
    %369 = vector.load %arg8[%c0_107, %c320] : memref<8x512xf32, #tpu.memory_space<vmem>>, vector<8x64xf32>
    tpu.vector_store %arg8[%c0_107, %c320], %367 {strides = array<i32>} : memref<8x512xf32, #tpu.memory_space<vmem>>, vector<8x64xf32>,
    %370 = vector.extract_strided_slice %5 {offsets = [48, 0], sizes = [8, 256], strides = [1, 1]} : vector<64x256xf32> to vector<8x256xf32>
    %cst_108 = arith.constant dense<0.000000e+00> : vector<8x256xf32>
    %371 = tpu.matmul %338, %6, %cst_108 {dimension_numbers = #tpu.dot_dimension_numbers<[1], [0], [0], [1], [0, 0, 1, 1], [], []>} : vector<8x64xf32>, vector<64x256xf32>, vector<8x256xf32> -> vector<8x256xf32>
    %372 = arith.addf %370, %371 : vector<8x256xf32>
    %373 = vector.extract_strided_slice %372 {offsets = [0, 0], sizes = [8, 64], strides = [1, 1]} : vector<8x256xf32> to vector<8x64xf32>
    %374 = arith.negf %373 : vector<8x64xf32>
    %375 = math.exp %374 : vector<8x64xf32>
    %cst_109 = arith.constant 1.000000e+00 : f32
    %376 = vector.broadcast %cst_109 : f32 to vector<8x64xf32>
    %377 = arith.addf %376, %375 : vector<8x64xf32>
    %378 = arith.divf %376, %377 : vector<8x64xf32>
    %379 = vector.extract_strided_slice %372 {offsets = [0, 64], sizes = [8, 64], strides = [1, 1]} : vector<8x256xf32> to vector<8x64xf32>
    %380 = arith.negf %379 : vector<8x64xf32>
    %381 = math.exp %380 : vector<8x64xf32>
    %cst_110 = arith.constant 1.000000e+00 : f32
    %382 = vector.broadcast %cst_110 : f32 to vector<8x64xf32>
    %383 = arith.addf %382, %381 : vector<8x64xf32>
    %384 = arith.divf %382, %383 : vector<8x64xf32>
    %385 = vector.extract_strided_slice %372 {offsets = [0, 128], sizes = [8, 64], strides = [1, 1]} : vector<8x256xf32> to vector<8x64xf32>
    %386 = math.tanh %385 : vector<8x64xf32>
    %387 = vector.extract_strided_slice %372 {offsets = [0, 192], sizes = [8, 64], strides = [1, 1]} : vector<8x256xf32> to vector<8x64xf32>
    %388 = arith.negf %387 : vector<8x64xf32>
    %389 = math.exp %388 : vector<8x64xf32>
    %cst_111 = arith.constant 1.000000e+00 : f32
    %390 = vector.broadcast %cst_111 : f32 to vector<8x64xf32>
    %391 = arith.addf %390, %389 : vector<8x64xf32>
    %392 = arith.divf %390, %391 : vector<8x64xf32>
    %393 = arith.mulf %384, %336 : vector<8x64xf32>
    %394 = arith.mulf %378, %386 : vector<8x64xf32>
    %395 = arith.addf %393, %394 : vector<8x64xf32>
    %396 = math.tanh %395 : vector<8x64xf32>
    %397 = arith.mulf %392, %396 : vector<8x64xf32>
    %c0_112 = arith.constant 0 : index
    %c0_113 = arith.constant 0 : index
    %398 = vector.load %arg10[%c0_112, %c0_113] : memref<8x128xf32, #tpu.memory_space<vmem>>, vector<8x64xf32>
    tpu.vector_store %arg10[%c0_112, %c0_113], %397 {strides = array<i32>} : memref<8x128xf32, #tpu.memory_space<vmem>>, vector<8x64xf32>,
    %c0_114 = arith.constant 0 : index
    %c0_115 = arith.constant 0 : index
    %399 = vector.load %arg10[%c0_114, %c0_115] : memref<8x128xf32, #tpu.memory_space<vmem>>, vector<8x128xf32>
    %cst_116 = arith.constant dense<0.000000e+00> : vector<8x256xf32>
    %400 = tpu.matmul %399, %7, %cst_116 {dimension_numbers = #tpu.dot_dimension_numbers<[1], [0], [0], [1], [0, 0, 1, 1], [], []>} : vector<8x128xf32>, vector<128x256xf32>, vector<8x256xf32> -> vector<8x256xf32>
    %401 = arith.addf %400, %10 : vector<8x256xf32>
    %402 = vector.extract_strided_slice %401 {offsets = [0, 0], sizes = [8, 64], strides = [1, 1]} : vector<8x256xf32> to vector<8x64xf32>
    %403 = arith.negf %402 : vector<8x64xf32>
    %404 = math.exp %403 : vector<8x64xf32>
    %cst_117 = arith.constant 1.000000e+00 : f32
    %405 = vector.broadcast %cst_117 : f32 to vector<8x64xf32>
    %406 = arith.addf %405, %404 : vector<8x64xf32>
    %407 = arith.divf %405, %406 : vector<8x64xf32>
    %408 = vector.extract_strided_slice %401 {offsets = [0, 64], sizes = [8, 64], strides = [1, 1]} : vector<8x256xf32> to vector<8x64xf32>
    %409 = arith.negf %408 : vector<8x64xf32>
    %410 = math.exp %409 : vector<8x64xf32>
    %cst_118 = arith.constant 1.000000e+00 : f32
    %411 = vector.broadcast %cst_118 : f32 to vector<8x64xf32>
    %412 = arith.addf %411, %410 : vector<8x64xf32>
    %413 = arith.divf %411, %412 : vector<8x64xf32>
    %414 = vector.extract_strided_slice %401 {offsets = [0, 128], sizes = [8, 64], strides = [1, 1]} : vector<8x256xf32> to vector<8x64xf32>
    %415 = math.tanh %414 : vector<8x64xf32>
    %416 = vector.extract_strided_slice %401 {offsets = [0, 192], sizes = [8, 64], strides = [1, 1]} : vector<8x256xf32> to vector<8x64xf32>
    %417 = arith.negf %416 : vector<8x64xf32>
    %418 = math.exp %417 : vector<8x64xf32>
    %cst_119 = arith.constant 1.000000e+00 : f32
    %419 = vector.broadcast %cst_119 : f32 to vector<8x64xf32>
    %420 = arith.addf %419, %418 : vector<8x64xf32>
    %421 = arith.divf %419, %420 : vector<8x64xf32>
    %422 = arith.mulf %413, %365 : vector<8x64xf32>
    %423 = arith.mulf %407, %415 : vector<8x64xf32>
    %424 = arith.addf %422, %423 : vector<8x64xf32>
    %425 = math.tanh %424 : vector<8x64xf32>
    %426 = arith.mulf %421, %425 : vector<8x64xf32>
    %c0_120 = arith.constant 0 : index
    %c64_121 = arith.constant 64 : index
    %427 = vector.load %arg10[%c0_120, %c64_121] : memref<8x128xf32, #tpu.memory_space<vmem>>, vector<8x64xf32>
    tpu.vector_store %arg10[%c0_120, %c64_121], %426 {strides = array<i32>} : memref<8x128xf32, #tpu.memory_space<vmem>>, vector<8x64xf32>,
    %c0_122 = arith.constant 0 : index
    %c384 = arith.constant 384 : index
    %428 = vector.load %arg8[%c0_122, %c384] : memref<8x512xf32, #tpu.memory_space<vmem>>, vector<8x64xf32>
    tpu.vector_store %arg8[%c0_122, %c384], %426 {strides = array<i32>} : memref<8x512xf32, #tpu.memory_space<vmem>>, vector<8x64xf32>,
    %429 = vector.extract_strided_slice %5 {offsets = [56, 0], sizes = [8, 256], strides = [1, 1]} : vector<64x256xf32> to vector<8x256xf32>
    %cst_123 = arith.constant dense<0.000000e+00> : vector<8x256xf32>
    %430 = tpu.matmul %397, %6, %cst_123 {dimension_numbers = #tpu.dot_dimension_numbers<[1], [0], [0], [1], [0, 0, 1, 1], [], []>} : vector<8x64xf32>, vector<64x256xf32>, vector<8x256xf32> -> vector<8x256xf32>
    %431 = arith.addf %429, %430 : vector<8x256xf32>
    %432 = vector.extract_strided_slice %431 {offsets = [0, 0], sizes = [8, 64], strides = [1, 1]} : vector<8x256xf32> to vector<8x64xf32>
    %433 = arith.negf %432 : vector<8x64xf32>
    %434 = math.exp %433 : vector<8x64xf32>
    %cst_124 = arith.constant 1.000000e+00 : f32
    %435 = vector.broadcast %cst_124 : f32 to vector<8x64xf32>
    %436 = arith.addf %435, %434 : vector<8x64xf32>
    %437 = arith.divf %435, %436 : vector<8x64xf32>
    %438 = vector.extract_strided_slice %431 {offsets = [0, 64], sizes = [8, 64], strides = [1, 1]} : vector<8x256xf32> to vector<8x64xf32>
    %439 = arith.negf %438 : vector<8x64xf32>
    %440 = math.exp %439 : vector<8x64xf32>
    %cst_125 = arith.constant 1.000000e+00 : f32
    %441 = vector.broadcast %cst_125 : f32 to vector<8x64xf32>
    %442 = arith.addf %441, %440 : vector<8x64xf32>
    %443 = arith.divf %441, %442 : vector<8x64xf32>
    %444 = vector.extract_strided_slice %431 {offsets = [0, 128], sizes = [8, 64], strides = [1, 1]} : vector<8x256xf32> to vector<8x64xf32>
    %445 = math.tanh %444 : vector<8x64xf32>
    %446 = vector.extract_strided_slice %431 {offsets = [0, 192], sizes = [8, 64], strides = [1, 1]} : vector<8x256xf32> to vector<8x64xf32>
    %447 = arith.negf %446 : vector<8x64xf32>
    %448 = math.exp %447 : vector<8x64xf32>
    %cst_126 = arith.constant 1.000000e+00 : f32
    %449 = vector.broadcast %cst_126 : f32 to vector<8x64xf32>
    %450 = arith.addf %449, %448 : vector<8x64xf32>
    %451 = arith.divf %449, %450 : vector<8x64xf32>
    %452 = arith.mulf %443, %395 : vector<8x64xf32>
    %453 = arith.mulf %437, %445 : vector<8x64xf32>
    %454 = arith.addf %452, %453 : vector<8x64xf32>
    %455 = math.tanh %454 : vector<8x64xf32>
    %456 = arith.mulf %451, %455 : vector<8x64xf32>
    %c0_127 = arith.constant 0 : index
    %c0_128 = arith.constant 0 : index
    %457 = vector.load %arg10[%c0_127, %c0_128] : memref<8x128xf32, #tpu.memory_space<vmem>>, vector<8x64xf32>
    tpu.vector_store %arg10[%c0_127, %c0_128], %456 {strides = array<i32>} : memref<8x128xf32, #tpu.memory_space<vmem>>, vector<8x64xf32>,
    %c0_129 = arith.constant 0 : index
    %c0_130 = arith.constant 0 : index
    %458 = vector.load %arg10[%c0_129, %c0_130] : memref<8x128xf32, #tpu.memory_space<vmem>>, vector<8x128xf32>
    %cst_131 = arith.constant dense<0.000000e+00> : vector<8x256xf32>
    %459 = tpu.matmul %458, %7, %cst_131 {dimension_numbers = #tpu.dot_dimension_numbers<[1], [0], [0], [1], [0, 0, 1, 1], [], []>} : vector<8x128xf32>, vector<128x256xf32>, vector<8x256xf32> -> vector<8x256xf32>
    %460 = arith.addf %459, %10 : vector<8x256xf32>
    %461 = vector.extract_strided_slice %460 {offsets = [0, 0], sizes = [8, 64], strides = [1, 1]} : vector<8x256xf32> to vector<8x64xf32>
    %462 = arith.negf %461 : vector<8x64xf32>
    %463 = math.exp %462 : vector<8x64xf32>
    %cst_132 = arith.constant 1.000000e+00 : f32
    %464 = vector.broadcast %cst_132 : f32 to vector<8x64xf32>
    %465 = arith.addf %464, %463 : vector<8x64xf32>
    %466 = arith.divf %464, %465 : vector<8x64xf32>
    %467 = vector.extract_strided_slice %460 {offsets = [0, 64], sizes = [8, 64], strides = [1, 1]} : vector<8x256xf32> to vector<8x64xf32>
    %468 = arith.negf %467 : vector<8x64xf32>
    %469 = math.exp %468 : vector<8x64xf32>
    %cst_133 = arith.constant 1.000000e+00 : f32
    %470 = vector.broadcast %cst_133 : f32 to vector<8x64xf32>
    %471 = arith.addf %470, %469 : vector<8x64xf32>
    %472 = arith.divf %470, %471 : vector<8x64xf32>
    %473 = vector.extract_strided_slice %460 {offsets = [0, 128], sizes = [8, 64], strides = [1, 1]} : vector<8x256xf32> to vector<8x64xf32>
    %474 = math.tanh %473 : vector<8x64xf32>
    %475 = vector.extract_strided_slice %460 {offsets = [0, 192], sizes = [8, 64], strides = [1, 1]} : vector<8x256xf32> to vector<8x64xf32>
    %476 = arith.negf %475 : vector<8x64xf32>
    %477 = math.exp %476 : vector<8x64xf32>
    %cst_134 = arith.constant 1.000000e+00 : f32
    %478 = vector.broadcast %cst_134 : f32 to vector<8x64xf32>
    %479 = arith.addf %478, %477 : vector<8x64xf32>
    %480 = arith.divf %478, %479 : vector<8x64xf32>
    %481 = arith.mulf %472, %424 : vector<8x64xf32>
    %482 = arith.mulf %466, %474 : vector<8x64xf32>
    %483 = arith.addf %481, %482 : vector<8x64xf32>
    %484 = math.tanh %483 : vector<8x64xf32>
    %485 = arith.mulf %480, %484 : vector<8x64xf32>
    %c0_135 = arith.constant 0 : index
    %c64_136 = arith.constant 64 : index
    %486 = vector.load %arg10[%c0_135, %c64_136] : memref<8x128xf32, #tpu.memory_space<vmem>>, vector<8x64xf32>
    tpu.vector_store %arg10[%c0_135, %c64_136], %485 {strides = array<i32>} : memref<8x128xf32, #tpu.memory_space<vmem>>, vector<8x64xf32>,
    %c0_137 = arith.constant 0 : index
    %c448 = arith.constant 448 : index
    %487 = vector.load %arg8[%c0_137, %c448] : memref<8x512xf32, #tpu.memory_space<vmem>>, vector<8x64xf32>
    tpu.vector_store %arg8[%c0_137, %c448], %485 {strides = array<i32>} : memref<8x512xf32, #tpu.memory_space<vmem>>, vector<8x64xf32>,
    %c0_138 = arith.constant 0 : index
    %c0_139 = arith.constant 0 : index
    %488 = vector.load %arg6[%c0_138, %c0_139] : memref<64x2xf32, #tpu.memory_space<vmem>>, vector<64x2xf32>
    %cst_140 = arith.constant dense<0.000000e+00> : vector<8x2xf32>
    %489 = tpu.matmul %485, %488, %cst_140 {dimension_numbers = #tpu.dot_dimension_numbers<[1], [0], [0], [1], [0, 0, 1, 1], [], []>} : vector<8x64xf32>, vector<64x2xf32>, vector<8x2xf32> -> vector<8x2xf32>
    %c0_141 = arith.constant 0 : index
    %c0_142 = arith.constant 0 : index
    %490 = vector.load %arg7[%c0_141, %c0_142] : memref<1x2xf32, #tpu.memory_space<vmem>>, vector<1x2xf32>
    %491 = vector.broadcast %490 : vector<1x2xf32> to vector<8x2xf32>
    %492 = arith.addf %489, %491 : vector<8x2xf32>
    %c0_143 = arith.constant 0 : index
    %c0_144 = arith.constant 0 : index
    %493 = vector.load %arg9[%c0_143, %c0_144] : memref<8x2xf32, #tpu.memory_space<vmem>>, vector<8x2xf32>
    tpu.vector_store %arg9[%c0_143, %c0_144], %492 {strides = array<i32>} : memref<8x2xf32, #tpu.memory_space<vmem>>, vector<8x2xf32>,
    return
  }
}

</mosaic_0001>

<llo_original>
// kernel: model_lstm_forward.1
$region0: #{model_lstm_forward.1}
  #allocation0 [shape = 'u32[]', space=smem, size = 0x4, offset = 0x4, fixed_abs, tag = 'smem constant byte address 0x4 - core index']
  #allocation1 [shape = 'u32[144,128]{1,0:T(1,128)}', space=vmem, size = 0x12000, scoped, tag = 'internal scratch']
  #allocation2 [shape = 'f32[8,128]{1,0:T(8,128)}', space=vmem, size = 0x1000, scoped, tag = 'scratch operand']
  %s0 = inlined_call_operand.vmem [shape: f32[64,32], index: 0, kind: input, shape index: {}]
  %s1 = inlined_call_operand.hbm [shape: f32[32,256], index: 1, kind: input, shape index: {}]
  %s2 = inlined_call_operand.hbm [shape: f32[64,256], index: 2, kind: input, shape index: {}]
  %s3 = inlined_call_operand.vmem [shape: f32[1,256], index: 3, kind: input, shape index: {}]
  %s4 = inlined_call_operand.vmem [shape: f32[128,256], index: 4, kind: input, shape index: {}]
  %s5 = inlined_call_operand.vmem [shape: f32[1,256], index: 5, kind: input, shape index: {}]
  %s6 = inlined_call_operand.vmem [shape: f32[64,2], index: 6, kind: input, shape index: {}]
  %s7 = inlined_call_operand.vmem [shape: f32[1,2], index: 7, kind: input, shape index: {}]
  %s8 = inlined_call_operand.vmem [shape: f32[8,512], index: 8, kind: output, shape index: {0}]
  %s9 = inlined_call_operand.vmem [shape: f32[8,2], index: 9, kind: output, shape index: {1}]
  %10 = xla_tuple %s8, %s9
  %s11 = sld [smem:[#allocation0]]
  $region58: #{model_lstm_forward.1} parent=0
    _
  %s13 = ssub.s32 1, %s11
  %s14 = scalar_select 0, %s13, %s11
  $region1: #{model_lstm_forward.1} parent=0
    #allocation3 [shape = 'u8[32768]{0}', space=vmem, size = 0x8000, scoped, tag = 'input window, operand 1, single buffered']
    #allocation4 [shape = 's32[1]{0}', space=sflag, size = 0x4, scoped, tag = 'scoped memory for model_lstm_forward.1']
    #allocation5 [shape = 'u8[65536]{0}', space=vmem, size = 0x10000, scoped, tag = 'input window, operand 2, single buffered']
    #allocation6 [shape = 's32[1]{0}', space=sflag, size = 0x4, scoped, tag = 'scoped memory for model_lstm_forward.1']
    %15 = vsyncpa [#allocation4], 0
    %16 = vsyncpa [#allocation6], 0
    // Predicated region
    $region2: #{model_lstm_forward.1} parent=1 // pred_check
      _
    $region3: #{model_lstm_forward.1} parent=1 // pred_check_branch
      %18 = sbr.rel (0) target = $region5
    $region4: #{model_lstm_forward.1} parent=1 // pred_region
      _
    $region5: #{model_lstm_forward.1} parent=1 // pred_fallthru
      _
    // Predicated region
    $region6: #{model_lstm_forward.1} parent=1 // pred_check
      _
    $region7: #{model_lstm_forward.1} parent=1 // pred_check_branch
      %20 = sbr.rel (0) target = $region9
    $region8: #{model_lstm_forward.1} parent=1 // pred_region
      %s22 = ssub.s32 1024, 1024
      %23 = vsyncadd [#allocation4], %s22
      %s24 = sshll.u32 [#allocation3], 4
      %s25 = int_to_ptr.vmem [resolvable:$true] %s24
      %30 = dma.hbm_to_vmem [thread:$0]  %s1, 1024, %s25, [#allocation4], 256, 256, 16
    $region9: #{model_lstm_forward.1} parent=1 // pred_fallthru
      _
    // Predicated region
    $region10: #{model_lstm_forward.1} parent=1 // pred_check
      _
    $region11: #{model_lstm_forward.1} parent=1 // pred_check_branch
      %32 = sbr.rel (0) target = $region13
    $region12: #{model_lstm_forward.1} parent=1 // pred_region
      %s34 = ssub.s32 2048, 2048
      %35 = vsyncadd [#allocation6], %s34
      %s36 = sshll.u32 [#allocation5], 4
      %s37 = int_to_ptr.vmem [resolvable:$true] %s36
      %42 = dma.hbm_to_vmem [thread:$0]  %s2, 2048, %s37, [#allocation6], 256, 256, 16
    $region13: #{model_lstm_forward.1} parent=1 // pred_fallthru
      _
    // Predicated region
    $region14: #{model_lstm_forward.1} parent=1 // pred_check
      _
    $region15: #{model_lstm_forward.1} parent=1 // pred_check_branch
      %44 = sbr.rel (0) target = $region17
    $region16: #{model_lstm_forward.1} parent=1 // pred_region
      _
    $region17: #{model_lstm_forward.1} parent=1 // pred_fallthru
      _
    // Predicated region
    $region18: #{model_lstm_forward.1} parent=1 // pred_check
      _
    $region19: #{model_lstm_forward.1} parent=1 // pred_check_branch
      %46 = sbr.rel (0) target = $region21
    $region20: #{model_lstm_forward.1} parent=1 // pred_region
      _
    $region21: #{model_lstm_forward.1} parent=1 // pred_fallthru
      _
    // Predicated region
    $region22: #{model_lstm_forward.1} parent=1 // pred_check
      _
    $region23: #{model_lstm_forward.1} parent=1 // pred_check_branch
      %48 = sbr.rel (0) target = $region25
    $region24: #{model_lstm_forward.1} parent=1 // pred_region
      _
    $region25: #{model_lstm_forward.1} parent=1 // pred_fallthru
      _
    // Predicated region
    $region26: #{model_lstm_forward.1} parent=1 // pred_check
      _
    $region27: #{model_lstm_forward.1} parent=1 // pred_check_branch
      %50 = sbr.rel (0) target = $region29
    $region28: #{model_lstm_forward.1} parent=1 // pred_region
      _
    $region29: #{model_lstm_forward.1} parent=1 // pred_fallthru
      _
    // Predicated region
    $region30: #{model_lstm_forward.1} parent=1 // pred_check
      _
    $region31: #{model_lstm_forward.1} parent=1 // pred_check_branch
      %52 = sbr.rel (0) target = $region33
    $region32: #{model_lstm_forward.1} parent=1 // pred_region
      _
    $region33: #{model_lstm_forward.1} parent=1 // pred_fallthru
      _
    // Predicated region
    $region34: #{model_lstm_forward.1} parent=1 // pred_check
      _
    $region35: #{model_lstm_forward.1} parent=1 // pred_check_branch
      %54 = sbr.rel (0) target = $region37
    $region36: #{model_lstm_forward.1} parent=1 // pred_region
      %55 = dma.done [#allocation4], 1024
    $region37: #{model_lstm_forward.1} parent=1 // pred_fallthru
      _
    // Predicated region
    $region38: #{model_lstm_forward.1} parent=1 // pred_check
      _
    $region39: #{model_lstm_forward.1} parent=1 // pred_check_branch
      %57 = sbr.rel (0) target = $region41
    $region40: #{model_lstm_forward.1} parent=1 // pred_region
      %58 = dma.done [#allocation6], 2048
    $region41: #{model_lstm_forward.1} parent=1 // pred_fallthru
      _
    %v59 = vld [vmem:[%s0] sm:$0xff]
    %v60 = vld [vmem:[%s0 + $0x8] sm:$0xff]
    %v61 = vld [vmem:[%s0 + $0x10] sm:$0xff]
    %v62 = vld [vmem:[%s0 + $0x18] sm:$0xff]
    %v63 = vld [vmem:[%s0 + $0x20] sm:$0xff]
    %v64 = vld [vmem:[%s0 + $0x28] sm:$0xff]
    %v65 = vld [vmem:[%s0 + $0x30] sm:$0xff]
    %v66 = vld [vmem:[%s0 + $0x38] sm:$0xff]
    %v67 = vld [vmem:[#allocation3] sm:$0xff]
    %v68 = vld [vmem:[#allocation3 + $0x8] sm:$0xff]
    %v69 = vld [vmem:[#allocation3 + $0x10] sm:$0xff]
    %v70 = vld [vmem:[#allocation3 + $0x18] sm:$0xff]
    %v71 = vld [vmem:[#allocation3 + $0x20] sm:$0xff]
    %v72 = vld [vmem:[#allocation3 + $0x28] sm:$0xff]
    %v73 = vld [vmem:[#allocation3 + $0x30] sm:$0xff]
    %v74 = vld [vmem:[#allocation3 + $0x38] sm:$0xff]
    %v75 = vld [vmem:[%s3] sm:$0x3]
    %v77 = vlaneseq
    %v78 = vshrl.u32 %v77, 7
    %v79 = vsub.s32 0, %v78
    %v80 = vrot.slane %v75, %v79
    %v81 = vlaneseq
    %v82 = vshrl.u32 %v81, 7
    %v83 = vsub.s32 1, %v82
    %v84 = vrot.slane %v75, %v83
    %vm87 = vcmask 261120
    %v89 = vsel %vm87, %v59, 0
    %v92 = vsel %vm87, %v60, 0
    %v95 = vsel %vm87, %v61, 0
    %v98 = vsel %vm87, %v62, 0
    %v101 = vsel %vm87, %v63, 0
    %v104 = vsel %vm87, %v64, 0
    %v107 = vsel %vm87, %v65, 0
    %v110 = vsel %vm87, %v66, 0
    %112 = vmatprep.subr.mxu0 0.0
    %113 = vmatpush1.msra.mxu0 0.0
    %114 = vmatprep.subr.mxu0 0.0
    %115 = vmatpush1.msra.mxu0 0.0
    %116 = vmatprep.subr.mxu0 0.0
    %117 = vmatpush1.msra.mxu0 0.0
    %118 = vmatprep.subr.mxu0 0.0
    %119 = vmatpush1.msra.mxu0 0.0
    %120 = vmatprep.subr.mxu0 0.0
    %121 = vmatpush1.msra.mxu0 0.0
    %122 = vmatprep.subr.mxu0 0.0
    %123 = vmatpush1.msra.mxu0 0.0
    %124 = vmatprep.subr.mxu0 0.0
    %125 = vmatpush1.msra.mxu0 0.0
    %126 = vmatprep.subr.mxu0 0.0
    %127 = vmatpush1.msra.mxu0 0.0
    %128 = vmatprep.subr.mxu0 0.0
    %129 = vmatpush1.msra.mxu0 0.0
    %130 = vmatprep.subr.mxu0 0.0
    %131 = vmatpush1.msra.mxu0 0.0
    %132 = vmatprep.subr.mxu0 0.0
    %133 = vmatpush1.msra.mxu0 0.0
    %134 = vmatprep.subr.mxu0 0.0
    %135 = vmatpush1.msra.mxu0 0.0
    %136 = vmatprep.subr.mxu0 %v74
    %137 = vmatpush1.msra.mxu0 %v73
    %138 = vmatprep.subr.mxu0 %v72
    %139 = vmatpush1.msra.mxu0 %v71
    %140 = vmatprep.subr.mxu0 %v70
    %141 = vmatpush1.msra.mxu0 %v69
    %142 = vmatprep.subr.mxu0 %v68
    %143 = vmatpush1.msra.mxu0 %v67
    %144 = vmatprep.subr.mxu0 0.0
    %145 = vmatpush2.msra.mxu0 0.0
    %146 = vmatprep.subr.mxu0 0.0
    %147 = vmatpush2.msra.mxu0 0.0
    %148 = vmatprep.subr.mxu0 0.0
    %149 = vmatpush2.msra.mxu0 0.0
    %150 = vmatprep.subr.mxu0 0.0
    %151 = vmatpush2.msra.mxu0 0.0
    %152 = vmatprep.subr.mxu0 0.0
    %153 = vmatpush2.msra.mxu0 0.0
    %154 = vmatprep.subr.mxu0 0.0
    %155 = vmatpush2.msra.mxu0 0.0
    %156 = vmatprep.subr.mxu0 0.0
    %157 = vmatpush2.msra.mxu0 0.0
    %158 = vmatprep.subr.mxu0 0.0
    %159 = vmatpush2.msra.mxu0 0.0
    %160 = vmatprep.subr.mxu0 0.0
    %161 = vmatpush2.msra.mxu0 0.0
    %162 = vmatprep.subr.mxu0 0.0
    %163 = vmatpush2.msra.mxu0 0.0
    %164 = vmatprep.subr.mxu0 0.0
    %165 = vmatpush2.msra.mxu0 0.0
    %166 = vmatprep.subr.mxu0 0.0
    %167 = vmatpush2.msra.mxu0 0.0
    %168 = vmatprep.subr.mxu0 0.0
    %169 = vmatpush2.msra.mxu0 0.0
    %170 = vmatprep.subr.mxu0 0.0
    %171 = vmatpush2.msra.mxu0 0.0
    %172 = vmatprep.subr.mxu0 0.0
    %173 = vmatpush2.msra.mxu0 0.0
    %174 = vmatprep.subr.mxu0 0.0
    %175 = vmatpush2.msra.mxu0 0.0
    %176 = vmatprep.mubr.f32.mxu0 0.0
    %177 = vmatmul.mubr.f32.gmra.mxu0 %v89
    %v178 = vpop.f32.mrf.mxu0
    %v179 = vadd.f32 %v80, %v178
    %v180 = vpop.f32.mrf.mxu0
    %v181 = vadd.f32 %v84, %v180
    %182 = vmatprep.mubr.f32.mxu0 0.0
    %183 = vmatmul.mubr.f32.gmra.mxu0 %v92
    %v184 = vpop.f32.mrf.mxu0
    %v185 = vadd.f32 %v80, %v184
    %v186 = vpop.f32.mrf.mxu0
    %v187 = vadd.f32 %v84, %v186
    %188 = vmatprep.mubr.f32.mxu0 0.0
    %189 = vmatmul.mubr.f32.gmra.mxu0 %v95
    %v190 = vpop.f32.mrf.mxu0
    %v191 = vadd.f32 %v80, %v190
    %v192 = vpop.f32.mrf.mxu0
    %v193 = vadd.f32 %v84, %v192
    %194 = vmatprep.mubr.f32.mxu0 0.0
    %195 = vmatmul.mubr.f32.gmra.mxu0 %v98
    %v196 = vpop.f32.mrf.mxu0
    %v197 = vadd.f32 %v80, %v196
    %v198 = vpop.f32.mrf.mxu0
    %v199 = vadd.f32 %v84, %v198
    %200 = vmatprep.mubr.f32.mxu0 0.0
    %201 = vmatmul.mubr.f32.gmra.mxu0 %v101
    %v202 = vpop.f32.mrf.mxu0
    %v203 = vadd.f32 %v80, %v202
    %v204 = vpop.f32.mrf.mxu0
    %v205 = vadd.f32 %v84, %v204
    %206 = vmatprep.mubr.f32.mxu0 0.0
    %207 = vmatmul.mubr.f32.gmra.mxu0 %v104
    %v208 = vpop.f32.mrf.mxu0
    %v209 = vadd.f32 %v80, %v208
    %v210 = vpop.f32.mrf.mxu0
    %v211 = vadd.f32 %v84, %v210
    %212 = vmatprep.mubr.f32.mxu0 0.0
    %213 = vmatmul.mubr.f32.gmra.mxu0 %v107
    %v214 = vpop.f32.mrf.mxu0
    %v215 = vadd.f32 %v80, %v214
    %v216 = vpop.f32.mrf.mxu0
    %v217 = vadd.f32 %v84, %v216
    %218 = vmatprep.mubr.f32.mxu0 0.0
    %219 = vmatmul.mubr.f32.gmra.mxu0 %v110
    %v220 = vpop.f32.mrf.mxu0
    %v221 = vadd.f32 %v80, %v220
    %v222 = vpop.f32.mrf.mxu0
    %v223 = vadd.f32 %v84, %v222
    %224 = vdwg.mxu0
    %v225 = vld [vmem:[#allocation5] sm:$0xff]
    %v226 = vld [vmem:[#allocation5 + $0x8] sm:$0xff]
    %v227 = vld [vmem:[#allocation5 + $0x10] sm:$0xff]
    %v228 = vld [vmem:[#allocation5 + $0x18] sm:$0xff]
    %v229 = vld [vmem:[#allocation5 + $0x20] sm:$0xff]
    %v230 = vld [vmem:[#allocation5 + $0x28] sm:$0xff]
    %v231 = vld [vmem:[#allocation5 + $0x30] sm:$0xff]
    %v232 = vld [vmem:[#allocation5 + $0x38] sm:$0xff]
    %v233 = vld [vmem:[#allocation5 + $0x40] sm:$0xff]
    %v234 = vld [vmem:[#allocation5 + $0x48] sm:$0xff]
    %v235 = vld [vmem:[#allocation5 + $0x50] sm:$0xff]
    %v236 = vld [vmem:[#allocation5 + $0x58] sm:$0xff]
    %v237 = vld [vmem:[#allocation5 + $0x60] sm:$0xff]
    %v238 = vld [vmem:[#allocation5 + $0x68] sm:$0xff]
    %v239 = vld [vmem:[#allocation5 + $0x70] sm:$0xff]
    %v240 = vld [vmem:[#allocation5 + $0x78] sm:$0xff]
    %v241 = vld [vmem:[%s4] sm:$0xff]
    %v242 = vld [vmem:[%s4 + $0x8] sm:$0xff]
    %v243 = vld [vmem:[%s4 + $0x10] sm:$0xff]
    %v244 = vld [vmem:[%s4 + $0x18] sm:$0xff]
    %v245 = vld [vmem:[%s4 + $0x20] sm:$0xff]
    %v246 = vld [vmem:[%s4 + $0x28] sm:$0xff]
    %v247 = vld [vmem:[%s4 + $0x30] sm:$0xff]
    %v248 = vld [vmem:[%s4 + $0x38] sm:$0xff]
    %v249 = vld [vmem:[%s4 + $0x40] sm:$0xff]
    %v250 = vld [vmem:[%s4 + $0x48] sm:$0xff]
    %v251 = vld [vmem:[%s4 + $0x50] sm:$0xff]
    %v252 = vld [vmem:[%s4 + $0x58] sm:$0xff]
    %v253 = vld [vmem:[%s4 + $0x60] sm:$0xff]
    %v254 = vld [vmem:[%s4 + $0x68] sm:$0xff]
    %v255 = vld [vmem:[%s4 + $0x70] sm:$0xff]
    %v256 = vld [vmem:[%s4 + $0x78] sm:$0xff]
    %v257 = vld [vmem:[%s4 + $0x80] sm:$0xff]
    %v258 = vld [vmem:[%s4 + $0x88] sm:$0xff]
    %v259 = vld [vmem:[%s4 + $0x90] sm:$0xff]
    %v260 = vld [vmem:[%s4 + $0x98] sm:$0xff]
    %v261 = vld [vmem:[%s4 + $0xa0] sm:$0xff]
    %v262 = vld [vmem:[%s4 + $0xa8] sm:$0xff]
    %v263 = vld [vmem:[%s4 + $0xb0] sm:$0xff]
    %v264 = vld [vmem:[%s4 + $0xb8] sm:$0xff]
    %v265 = vld [vmem:[%s4 + $0xc0] sm:$0xff]
    %v266 = vld [vmem:[%s4 + $0xc8] sm:$0xff]
    %v267 = vld [vmem:[%s4 + $0xd0] sm:$0xff]
    %v268 = vld [vmem:[%s4 + $0xd8] sm:$0xff]
    %v269 = vld [vmem:[%s4 + $0xe0] sm:$0xff]
    %v270 = vld [vmem:[%s4 + $0xe8] sm:$0xff]
    %v271 = vld [vmem:[%s4 + $0xf0] sm:$0xff]
    %v272 = vld [vmem:[%s4 + $0xf8] sm:$0xff]
    %v273 = vld [vmem:[%s5] sm:$0x3]
    %v275 = vlaneseq
    %v276 = vshrl.u32 %v275, 7
    %v277 = vsub.s32 0, %v276
    %v278 = vrot.slane %v273, %v277
    %v279 = vlaneseq
    %v280 = vshrl.u32 %v279, 7
    %v281 = vsub.s32 1, %v280
    %v282 = vrot.slane %v273, %v281
    %285 = vst [vmem:[#allocation2] sm:$0xff] 0.0
    %vm286 = vcmask 523264
    %v288 = vsel %vm286, 0.0, 0
    %290 = vmatprep.subr.mxu0 0.0
    %291 = vmatpush1.msra.mxu0 0.0
    %292 = vmatprep.subr.mxu0 0.0
    %293 = vmatpush1.msra.mxu0 0.0
    %294 = vmatprep.subr.mxu0 0.0
    %295 = vmatpush1.msra.mxu0 0.0
    %296 = vmatprep.subr.mxu0 0.0
    %297 = vmatpush1.msra.mxu0 0.0
    %298 = vmatprep.subr.mxu0 0.0
    %299 = vmatpush1.msra.mxu0 0.0
    %300 = vmatprep.subr.mxu0 0.0
    %301 = vmatpush1.msra.mxu0 0.0
    %302 = vmatprep.subr.mxu0 0.0
    %303 = vmatpush1.msra.mxu0 0.0
    %304 = vmatprep.subr.mxu0 0.0
    %305 = vmatpush1.msra.mxu0 0.0
    %306 = vmatprep.subr.mxu0 %v240
    %307 = vmatpush1.msra.mxu0 %v239
    %308 = vmatprep.subr.mxu0 %v238
    %309 = vmatpush1.msra.mxu0 %v237
    %310 = vmatprep.subr.mxu0 %v236
    %311 = vmatpush1.msra.mxu0 %v235
    %312 = vmatprep.subr.mxu0 %v234
    %313 = vmatpush1.msra.mxu0 %v233
    %314 = vmatprep.subr.mxu0 %v232
    %315 = vmatpush1.msra.mxu0 %v231
    %316 = vmatprep.subr.mxu0 %v230
    %317 = vmatpush1.msra.mxu0 %v229
    %318 = vmatprep.subr.mxu0 %v228
    %319 = vmatpush1.msra.mxu0 %v227
    %320 = vmatprep.subr.mxu0 %v226
    %321 = vmatpush1.msra.mxu0 %v225
    %322 = vmatprep.subr.mxu0 0.0
    %323 = vmatpush2.msra.mxu0 0.0
    %324 = vmatprep.subr.mxu0 0.0
    %325 = vmatpush2.msra.mxu0 0.0
    %326 = vmatprep.subr.mxu0 0.0
    %327 = vmatpush2.msra.mxu0 0.0
    %328 = vmatprep.subr.mxu0 0.0
    %329 = vmatpush2.msra.mxu0 0.0
    %330 = vmatprep.subr.mxu0 0.0
    %331 = vmatpush2.msra.mxu0 0.0
    %332 = vmatprep.subr.mxu0 0.0
    %333 = vmatpush2.msra.mxu0 0.0
    %334 = vmatprep.subr.mxu0 0.0
    %335 = vmatpush2.msra.mxu0 0.0
    %336 = vmatprep.subr.mxu0 0.0
    %337 = vmatpush2.msra.mxu0 0.0
    %338 = vmatprep.subr.mxu0 0.0
    %339 = vmatpush2.msra.mxu0 0.0
    %340 = vmatprep.subr.mxu0 0.0
    %341 = vmatpush2.msra.mxu0 0.0
    %342 = vmatprep.subr.mxu0 0.0
    %343 = vmatpush2.msra.mxu0 0.0
    %344 = vmatprep.subr.mxu0 0.0
    %345 = vmatpush2.msra.mxu0 0.0
    %346 = vmatprep.subr.mxu0 0.0
    %347 = vmatpush2.msra.mxu0 0.0
    %348 = vmatprep.subr.mxu0 0.0
    %349 = vmatpush2.msra.mxu0 0.0
    %350 = vmatprep.subr.mxu0 0.0
    %351 = vmatpush2.msra.mxu0 0.0
    %352 = vmatprep.subr.mxu0 0.0
    %353 = vmatpush2.msra.mxu0 0.0
    %354 = vmatprep.mubr.f32.mxu0 0.0
    %355 = vmatmul.mubr.f32.gmra.mxu0 %v288
    %v356 = vpop.f32.mrf.mxu0
    %v357 = vadd.f32 0.0, %v356
    %v358 = vpop.f32.mrf.mxu0
    %v359 = vadd.f32 0.0, %v358
    %360 = vdwg.mxu0
    %v361 = vadd.f32 %v179, %v357
    %v362 = vadd.f32 %v181, %v359
    %v363 = vxor.u32 %v361, 2147483648
    %v364 = vmul.f32 %v363, 1.442695
    %v365 = vpow.pop %v364
    %v366 = vadd.f32 %v365, 1.0
    %v367 = vrcp.pop %v366
    %v368 = vmul.f32 1.0, %v367
    %v369 = vtanh.pop %v362
    %v370 = vxor.u32 %v362, 2147483648
    %v371 = vmul.f32 %v370, 1.442695
    %v372 = vpow.pop %v371
    %v373 = vadd.f32 %v372, 1.0
    %v374 = vrcp.pop %v373
    %v375 = vmul.f32 1.0, %v374
    %v376 = vmul.f32 %v368, 0.0
    %v377 = vmul.f32 %v368, %v369
    %379 = vrot.lane.b32.xlu0 %v377, 64
    %v380 = vpop.permute.xlu0 %379
    %v382 = vadd.f32 %v376, %v380
    %v383 = vtanh.pop %v382
    %v384 = vmul.f32 %v375, %v383
    %386 = vrot.lane.b32.xlu0 %v384, 64
    %v387 = vpop.permute.xlu0 %386
    %389 = vst.msk [vmem:[#allocation2] sm:$0xff] %vm286, %v387
    %v390 = vld [vmem:[#allocation2] sm:$0xff]
    %391 = vmatprep.subr.mxu0 %v272
    %392 = vmatpush1.msra.mxu0 %v271
    %393 = vmatprep.subr.mxu0 %v270
    %394 = vmatpush1.msra.mxu0 %v269
    %395 = vmatprep.subr.mxu0 %v268
    %396 = vmatpush1.msra.mxu0 %v267
    %397 = vmatprep.subr.mxu0 %v266
    %398 = vmatpush1.msra.mxu0 %v265
    %399 = vmatprep.subr.mxu0 %v264
    %400 = vmatpush1.msra.mxu0 %v263
    %401 = vmatprep.subr.mxu0 %v262
    %402 = vmatpush1.msra.mxu0 %v261
    %403 = vmatprep.subr.mxu0 %v260
    %404 = vmatpush1.msra.mxu0 %v259
    %405 = vmatprep.subr.mxu0 %v258
    %406 = vmatpush1.msra.mxu0 %v257
    %407 = vmatprep.subr.mxu0 %v256
    %408 = vmatpush1.msra.mxu0 %v255
    %409 = vmatprep.subr.mxu0 %v254
    %410 = vmatpush1.msra.mxu0 %v253
    %411 = vmatprep.subr.mxu0 %v252
    %412 = vmatpush1.msra.mxu0 %v251
    %413 = vmatprep.subr.mxu0 %v250
    %414 = vmatpush1.msra.mxu0 %v249
    %415 = vmatprep.subr.mxu0 %v248
    %416 = vmatpush1.msra.mxu0 %v247
    %417 = vmatprep.subr.mxu0 %v246
    %418 = vmatpush1.msra.mxu0 %v245
    %419 = vmatprep.subr.mxu0 %v244
    %420 = vmatpush1.msra.mxu0 %v243
    %421 = vmatprep.subr.mxu0 %v242
    %422 = vmatpush1.msra.mxu0 %v241
    %423 = vmatprep.subr.mxu0 0.0
    %424 = vmatpush2.msra.mxu0 0.0
    %425 = vmatprep.subr.mxu0 0.0
    %426 = vmatpush2.msra.mxu0 0.0
    %427 = vmatprep.subr.mxu0 0.0
    %428 = vmatpush2.msra.mxu0 0.0
    %429 = vmatprep.subr.mxu0 0.0
    %430 = vmatpush2.msra.mxu0 0.0
    %431 = vmatprep.subr.mxu0 0.0
    %432 = vmatpush2.msra.mxu0 0.0
    %433 = vmatprep.subr.mxu0 0.0
    %434 = vmatpush2.msra.mxu0 0.0
    %435 = vmatprep.subr.mxu0 0.0
    %436 = vmatpush2.msra.mxu0 0.0
    %437 = vmatprep.subr.mxu0 0.0
    %438 = vmatpush2.msra.mxu0 0.0
    %439 = vmatprep.subr.mxu0 0.0
    %440 = vmatpush2.msra.mxu0 0.0
    %441 = vmatprep.subr.mxu0 0.0
    %442 = vmatpush2.msra.mxu0 0.0
    %443 = vmatprep.subr.mxu0 0.0
    %444 = vmatpush2.msra.mxu0 0.0
    %445 = vmatprep.subr.mxu0 0.0
    %446 = vmatpush2.msra.mxu0 0.0
    %447 = vmatprep.subr.mxu0 0.0
    %448 = vmatpush2.msra.mxu0 0.0
    %449 = vmatprep.subr.mxu0 0.0
    %450 = vmatpush2.msra.mxu0 0.0
    %451 = vmatprep.subr.mxu0 0.0
    %452 = vmatpush2.msra.mxu0 0.0
    %453 = vmatprep.subr.mxu0 0.0
    %454 = vmatpush2.msra.mxu0 0.0
    %455 = vmatprep.mubr.f32.mxu0 0.0
    %456 = vmatmul.mubr.f32.gmra.mxu0 %v390
    %v457 = vpop.f32.mrf.mxu0
    %v458 = vadd.f32 %v278, %v457
    %v459 = vpop.f32.mrf.mxu0
    %v460 = vadd.f32 %v282, %v459
    %461 = vdwg.mxu0
    %v462 = vxor.u32 %v458, 2147483648
    %v463 = vmul.f32 %v462, 1.442695
    %v464 = vpow.pop %v463
    %v465 = vadd.f32 %v464, 1.0
    %v466 = vrcp.pop %v465
    %v467 = vmul.f32 1.0, %v466
    %v468 = vtanh.pop %v460
    %v469 = vxor.u32 %v460, 2147483648
    %v470 = vmul.f32 %v469, 1.442695
    %v471 = vpow.pop %v470
    %v472 = vadd.f32 %v471, 1.0
    %v473 = vrcp.pop %v472
    %v474 = vmul.f32 1.0, %v473
    %v475 = vmul.f32 %v467, 0.0
    %v476 = vmul.f32 %v467, %v468
    %478 = vrot.lane.b32.xlu0 %v476, 64
    %v479 = vpop.permute.xlu0 %478
    %v481 = vadd.f32 %v475, %v479
    %v482 = vtanh.pop %v481
    %v483 = vmul.f32 %v474, %v482
    %vm484 = vcmask 1048064
    %485 = vst.msk [vmem:[#allocation2] sm:$0xff] %vm484, %v483
    %487 = vrot.lane.b32.xlu0 %v483, 64
    %v488 = vpop.permute.xlu0 %487
    %490 = vst.msk [vmem:[%s8] sm:$0xff] %vm286, %v488
    %v491 = vsel %vm286, %v387, 0
    %493 = vmatprep.subr.mxu0 0.0
    %494 = vmatpush1.msra.mxu0 0.0
    %495 = vmatprep.subr.mxu0 0.0
    %496 = vmatpush1.msra.mxu0 0.0
    %497 = vmatprep.subr.mxu0 0.0
    %498 = vmatpush1.msra.mxu0 0.0
    %499 = vmatprep.subr.mxu0 0.0
    %500 = vmatpush1.msra.mxu0 0.0
    %501 = vmatprep.subr.mxu0 0.0
    %502 = vmatpush1.msra.mxu0 0.0
    %503 = vmatprep.subr.mxu0 0.0
    %504 = vmatpush1.msra.mxu0 0.0
    %505 = vmatprep.subr.mxu0 0.0
    %506 = vmatpush1.msra.mxu0 0.0
    %507 = vmatprep.subr.mxu0 0.0
    %508 = vmatpush1.msra.mxu0 0.0
    %509 = vmatprep.subr.mxu0 %v240
    %510 = vmatpush1.msra.mxu0 %v239
    %511 = vmatprep.subr.mxu0 %v238
    %512 = vmatpush1.msra.mxu0 %v237
    %513 = vmatprep.subr.mxu0 %v236
    %514 = vmatpush1.msra.mxu0 %v235
    %515 = vmatprep.subr.mxu0 %v234
    %516 = vmatpush1.msra.mxu0 %v233
    %517 = vmatprep.subr.mxu0 %v232
    %518 = vmatpush1.msra.mxu0 %v231
    %519 = vmatprep.subr.mxu0 %v230
    %520 = vmatpush1.msra.mxu0 %v229
    %521 = vmatprep.subr.mxu0 %v228
    %522 = vmatpush1.msra.mxu0 %v227
    %523 = vmatprep.subr.mxu0 %v226
    %524 = vmatpush1.msra.mxu0 %v225
    %525 = vmatprep.subr.mxu0 0.0
    %526 = vmatpush2.msra.mxu0 0.0
    %527 = vmatprep.subr.mxu0 0.0
    %528 = vmatpush2.msra.mxu0 0.0
    %529 = vmatprep.subr.mxu0 0.0
    %530 = vmatpush2.msra.mxu0 0.0
    %531 = vmatprep.subr.mxu0 0.0
    %532 = vmatpush2.msra.mxu0 0.0
    %533 = vmatprep.subr.mxu0 0.0
    %534 = vmatpush2.msra.mxu0 0.0
    %535 = vmatprep.subr.mxu0 0.0
    %536 = vmatpush2.msra.mxu0 0.0
    %537 = vmatprep.subr.mxu0 0.0
    %538 = vmatpush2.msra.mxu0 0.0
    %539 = vmatprep.subr.mxu0 0.0
    %540 = vmatpush2.msra.mxu0 0.0
    %541 = vmatprep.subr.mxu0 0.0
    %542 = vmatpush2.msra.mxu0 0.0
    %543 = vmatprep.subr.mxu0 0.0
    %544 = vmatpush2.msra.mxu0 0.0
    %545 = vmatprep.subr.mxu0 0.0
    %546 = vmatpush2.msra.mxu0 0.0
    %547 = vmatprep.subr.mxu0 0.0
    %548 = vmatpush2.msra.mxu0 0.0
    %549 = vmatprep.subr.mxu0 0.0
    %550 = vmatpush2.msra.mxu0 0.0
    %551 = vmatprep.subr.mxu0 0.0
    %552 = vmatpush2.msra.mxu0 0.0
    %553 = vmatprep.subr.mxu0 0.0
    %554 = vmatpush2.msra.mxu0 0.0
    %555 = vmatprep.subr.mxu0 0.0
    %556 = vmatpush2.msra.mxu0 0.0
    %557 = vmatprep.mubr.f32.mxu0 0.0
    %558 = vmatmul.mubr.f32.gmra.mxu0 %v491
    %v559 = vpop.f32.mrf.mxu0
    %v560 = vadd.f32 0.0, %v559
    %v561 = vpop.f32.mrf.mxu0
    %v562 = vadd.f32 0.0, %v561
    %563 = vdwg.mxu0
    %v564 = vadd.f32 %v185, %v560
    %v565 = vadd.f32 %v187, %v562
    %v566 = vxor.u32 %v564, 2147483648
    %v567 = vmul.f32 %v566, 1.442695
    %v568 = vpow.pop %v567
    %v569 = vadd.f32 %v568, 1.0
    %v570 = vrcp.pop %v569
    %v571 = vmul.f32 1.0, %v570
    %v572 = vtanh.pop %v565
    %v573 = vxor.u32 %v565, 2147483648
    %v574 = vmul.f32 %v573, 1.442695
    %v575 = vpow.pop %v574
    %v576 = vadd.f32 %v575, 1.0
    %v577 = vrcp.pop %v576
    %v578 = vmul.f32 1.0, %v577
    %v579 = vmul.f32 %v571, %v382
    %v580 = vmul.f32 %v571, %v572
    %582 = vrot.lane.b32.xlu0 %v580, 64
    %v583 = vpop.permute.xlu0 %582
    %v585 = vadd.f32 %v579, %v583
    %v586 = vtanh.pop %v585
    %v587 = vmul.f32 %v578, %v586
    %589 = vrot.lane.b32.xlu0 %v587, 64
    %v590 = vpop.permute.xlu0 %589
    %592 = vst.msk [vmem:[#allocation2] sm:$0xff] %vm286, %v590
    %v593 = vld [vmem:[#allocation2] sm:$0xff]
    %594 = vmatprep.subr.mxu0 %v272
    %595 = vmatpush1.msra.mxu0 %v271
    %596 = vmatprep.subr.mxu0 %v270
    %597 = vmatpush1.msra.mxu0 %v269
    %598 = vmatprep.subr.mxu0 %v268
    %599 = vmatpush1.msra.mxu0 %v267
    %600 = vmatprep.subr.mxu0 %v266
    %601 = vmatpush1.msra.mxu0 %v265
    %602 = vmatprep.subr.mxu0 %v264
    %603 = vmatpush1.msra.mxu0 %v263
    %604 = vmatprep.subr.mxu0 %v262
    %605 = vmatpush1.msra.mxu0 %v261
    %606 = vmatprep.subr.mxu0 %v260
    %607 = vmatpush1.msra.mxu0 %v259
    %608 = vmatprep.subr.mxu0 %v258
    %609 = vmatpush1.msra.mxu0 %v257
    %610 = vmatprep.subr.mxu0 %v256
    %611 = vmatpush1.msra.mxu0 %v255
    %612 = vmatprep.subr.mxu0 %v254
    %613 = vmatpush1.msra.mxu0 %v253
    %614 = vmatprep.subr.mxu0 %v252
    %615 = vmatpush1.msra.mxu0 %v251
    %616 = vmatprep.subr.mxu0 %v250
    %617 = vmatpush1.msra.mxu0 %v249
    %618 = vmatprep.subr.mxu0 %v248
    %619 = vmatpush1.msra.mxu0 %v247
    %620 = vmatprep.subr.mxu0 %v246
    %621 = vmatpush1.msra.mxu0 %v245
    %622 = vmatprep.subr.mxu0 %v244
    %623 = vmatpush1.msra.mxu0 %v243
    %624 = vmatprep.subr.mxu0 %v242
    %625 = vmatpush1.msra.mxu0 %v241
    %626 = vmatprep.subr.mxu0 0.0
    %627 = vmatpush2.msra.mxu0 0.0
    %628 = vmatprep.subr.mxu0 0.0
    %629 = vmatpush2.msra.mxu0 0.0
    %630 = vmatprep.subr.mxu0 0.0
    %631 = vmatpush2.msra.mxu0 0.0
    %632 = vmatprep.subr.mxu0 0.0
    %633 = vmatpush2.msra.mxu0 0.0
    %634 = vmatprep.subr.mxu0 0.0
    %635 = vmatpush2.msra.mxu0 0.0
    %636 = vmatprep.subr.mxu0 0.0
    %637 = vmatpush2.msra.mxu0 0.0
    %638 = vmatprep.subr.mxu0 0.0
    %639 = vmatpush2.msra.mxu0 0.0
    %640 = vmatprep.subr.mxu0 0.0
    %641 = vmatpush2.msra.mxu0 0.0
    %642 = vmatprep.subr.mxu0 0.0
    %643 = vmatpush2.msra.mxu0 0.0
    %644 = vmatprep.subr.mxu0 0.0
    %645 = vmatpush2.msra.mxu0 0.0
    %646 = vmatprep.subr.mxu0 0.0
    %647 = vmatpush2.msra.mxu0 0.0
    %648 = vmatprep.subr.mxu0 0.0
    %649 = vmatpush2.msra.mxu0 0.0
    %650 = vmatprep.subr.mxu0 0.0
    %651 = vmatpush2.msra.mxu0 0.0
    %652 = vmatprep.subr.mxu0 0.0
    %653 = vmatpush2.msra.mxu0 0.0
    %654 = vmatprep.subr.mxu0 0.0
    %655 = vmatpush2.msra.mxu0 0.0
    %656 = vmatprep.subr.mxu0 0.0
    %657 = vmatpush2.msra.mxu0 0.0
    %658 = vmatprep.mubr.f32.mxu0 0.0
    %659 = vmatmul.mubr.f32.gmra.mxu0 %v593
    %v660 = vpop.f32.mrf.mxu0
    %v661 = vadd.f32 %v278, %v660
    %v662 = vpop.f32.mrf.mxu0
    %v663 = vadd.f32 %v282, %v662
    %664 = vdwg.mxu0
    %v665 = vxor.u32 %v661, 2147483648
    %v666 = vmul.f32 %v665, 1.442695
    %v667 = vpow.pop %v666
    %v668 = vadd.f32 %v667, 1.0
    %v669 = vrcp.pop %v668
    %v670 = vmul.f32 1.0, %v669
    %v671 = vtanh.pop %v663
    %v672 = vxor.u32 %v663, 2147483648
    %v673 = vmul.f32 %v672, 1.442695
    %v674 = vpow.pop %v673
    %v675 = vadd.f32 %v674, 1.0
    %v676 = vrcp.pop %v675
    %v677 = vmul.f32 1.0, %v676
    %v678 = vmul.f32 %v670, %v481
    %v679 = vmul.f32 %v670, %v671
    %681 = vrot.lane.b32.xlu0 %v679, 64
    %v682 = vpop.permute.xlu0 %681
    %v684 = vadd.f32 %v678, %v682
    %v685 = vtanh.pop %v684
    %v686 = vmul.f32 %v677, %v685
    %687 = vst.msk [vmem:[#allocation2] sm:$0xff] %vm484, %v686
    %688 = vst.msk [vmem:[%s8] sm:$0xff] %vm484, %v686
    %v689 = vsel %vm286, %v590, 0
    %691 = vmatprep.subr.mxu0 0.0
    %692 = vmatpush1.msra.mxu0 0.0
    %693 = vmatprep.subr.mxu0 0.0
    %694 = vmatpush1.msra.mxu0 0.0
    %695 = vmatprep.subr.mxu0 0.0
    %696 = vmatpush1.msra.mxu0 0.0
    %697 = vmatprep.subr.mxu0 0.0
    %698 = vmatpush1.msra.mxu0 0.0
    %699 = vmatprep.subr.mxu0 0.0
    %700 = vmatpush1.msra.mxu0 0.0
    %701 = vmatprep.subr.mxu0 0.0
    %702 = vmatpush1.msra.mxu0 0.0
    %703 = vmatprep.subr.mxu0 0.0
    %704 = vmatpush1.msra.mxu0 0.0
    %705 = vmatprep.subr.mxu0 0.0
    %706 = vmatpush1.msra.mxu0 0.0
    %707 = vmatprep.subr.mxu0 %v240
    %708 = vmatpush1.msra.mxu0 %v239
    %709 = vmatprep.subr.mxu0 %v238
    %710 = vmatpush1.msra.mxu0 %v237
    %711 = vmatprep.subr.mxu0 %v236
    %712 = vmatpush1.msra.mxu0 %v235
    %713 = vmatprep.subr.mxu0 %v234
    %714 = vmatpush1.msra.mxu0 %v233
    %715 = vmatprep.subr.mxu0 %v232
    %716 = vmatpush1.msra.mxu0 %v231
    %717 = vmatprep.subr.mxu0 %v230
    %718 = vmatpush1.msra.mxu0 %v229
    %719 = vmatprep.subr.mxu0 %v228
    %720 = vmatpush1.msra.mxu0 %v227
    %721 = vmatprep.subr.mxu0 %v226
    %722 = vmatpush1.msra.mxu0 %v225
    %723 = vmatprep.subr.mxu0 0.0
    %724 = vmatpush2.msra.mxu0 0.0
    %725 = vmatprep.subr.mxu0 0.0
    %726 = vmatpush2.msra.mxu0 0.0
    %727 = vmatprep.subr.mxu0 0.0
    %728 = vmatpush2.msra.mxu0 0.0
    %729 = vmatprep.subr.mxu0 0.0
    %730 = vmatpush2.msra.mxu0 0.0
    %731 = vmatprep.subr.mxu0 0.0
    %732 = vmatpush2.msra.mxu0 0.0
    %733 = vmatprep.subr.mxu0 0.0
    %734 = vmatpush2.msra.mxu0 0.0
    %735 = vmatprep.subr.mxu0 0.0
    %736 = vmatpush2.msra.mxu0 0.0
    %737 = vmatprep.subr.mxu0 0.0
    %738 = vmatpush2.msra.mxu0 0.0
    %739 = vmatprep.subr.mxu0 0.0
    %740 = vmatpush2.msra.mxu0 0.0
    %741 = vmatprep.subr.mxu0 0.0
    %742 = vmatpush2.msra.mxu0 0.0
    %743 = vmatprep.subr.mxu0 0.0
    %744 = vmatpush2.msra.mxu0 0.0
    %745 = vmatprep.subr.mxu0 0.0
    %746 = vmatpush2.msra.mxu0 0.0
    %747 = vmatprep.subr.mxu0 0.0
    %748 = vmatpush2.msra.mxu0 0.0
    %749 = vmatprep.subr.mxu0 0.0
    %750 = vmatpush2.msra.mxu0 0.0
    %751 = vmatprep.subr.mxu0 0.0
    %752 = vmatpush2.msra.mxu0 0.0
    %753 = vmatprep.subr.mxu0 0.0
    %754 = vmatpush2.msra.mxu0 0.0
    %755 = vmatprep.mubr.f32.mxu0 0.0
    %756 = vmatmul.mubr.f32.gmra.mxu0 %v689
    %v757 = vpop.f32.mrf.mxu0
    %v758 = vadd.f32 0.0, %v757
    %v759 = vpop.f32.mrf.mxu0
    %v760 = vadd.f32 0.0, %v759
    %761 = vdwg.mxu0
    %v762 = vadd.f32 %v191, %v758
    %v763 = vadd.f32 %v193, %v760
    %v764 = vxor.u32 %v762, 2147483648
    %v765 = vmul.f32 %v764, 1.442695
    %v766 = vpow.pop %v765
    %v767 = vadd.f32 %v766, 1.0
    %v768 = vrcp.pop %v767
    %v769 = vmul.f32 1.0, %v768
    %v770 = vtanh.pop %v763
    %v771 = vxor.u32 %v763, 2147483648
    %v772 = vmul.f32 %v771, 1.442695
    %v773 = vpow.pop %v772
    %v774 = vadd.f32 %v773, 1.0
    %v775 = vrcp.pop %v774
    %v776 = vmul.f32 1.0, %v775
    %v777 = vmul.f32 %v769, %v585
    %v778 = vmul.f32 %v769, %v770
    %780 = vrot.lane.b32.xlu0 %v778, 64
    %v781 = vpop.permute.xlu0 %780
    %v783 = vadd.f32 %v777, %v781
    %v784 = vtanh.pop %v783
    %v785 = vmul.f32 %v776, %v784
    %787 = vrot.lane.b32.xlu0 %v785, 64
    %v788 = vpop.permute.xlu0 %787
    %790 = vst.msk [vmem:[#allocation2] sm:$0xff] %vm286, %v788
    %v791 = vld [vmem:[#allocation2] sm:$0xff]
    %792 = vmatprep.subr.mxu0 %v272
    %793 = vmatpush1.msra.mxu0 %v271
    %794 = vmatprep.subr.mxu0 %v270
    %795 = vmatpush1.msra.mxu0 %v269
    %796 = vmatprep.subr.mxu0 %v268
    %797 = vmatpush1.msra.mxu0 %v267
    %798 = vmatprep.subr.mxu0 %v266
    %799 = vmatpush1.msra.mxu0 %v265
    %800 = vmatprep.subr.mxu0 %v264
    %801 = vmatpush1.msra.mxu0 %v263
    %802 = vmatprep.subr.mxu0 %v262
    %803 = vmatpush1.msra.mxu0 %v261
    %804 = vmatprep.subr.mxu0 %v260
    %805 = vmatpush1.msra.mxu0 %v259
    %806 = vmatprep.subr.mxu0 %v258
    %807 = vmatpush1.msra.mxu0 %v257
    %808 = vmatprep.subr.mxu0 %v256
    %809 = vmatpush1.msra.mxu0 %v255
    %810 = vmatprep.subr.mxu0 %v254
    %811 = vmatpush1.msra.mxu0 %v253
    %812 = vmatprep.subr.mxu0 %v252
    %813 = vmatpush1.msra.mxu0 %v251
    %814 = vmatprep.subr.mxu0 %v250
    %815 = vmatpush1.msra.mxu0 %v249
    %816 = vmatprep.subr.mxu0 %v248
    %817 = vmatpush1.msra.mxu0 %v247
    %818 = vmatprep.subr.mxu0 %v246
    %819 = vmatpush1.msra.mxu0 %v245
    %820 = vmatprep.subr.mxu0 %v244
    %821 = vmatpush1.msra.mxu0 %v243
    %822 = vmatprep.subr.mxu0 %v242
    %823 = vmatpush1.msra.mxu0 %v241
    %824 = vmatprep.subr.mxu0 0.0
    %825 = vmatpush2.msra.mxu0 0.0
    %826 = vmatprep.subr.mxu0 0.0
    %827 = vmatpush2.msra.mxu0 0.0
    %828 = vmatprep.subr.mxu0 0.0
    %829 = vmatpush2.msra.mxu0 0.0
    %830 = vmatprep.subr.mxu0 0.0
    %831 = vmatpush2.msra.mxu0 0.0
    %832 = vmatprep.subr.mxu0 0.0
    %833 = vmatpush2.msra.mxu0 0.0
    %834 = vmatprep.subr.mxu0 0.0
    %835 = vmatpush2.msra.mxu0 0.0
    %836 = vmatprep.subr.mxu0 0.0
    %837 = vmatpush2.msra.mxu0 0.0
    %838 = vmatprep.subr.mxu0 0.0
    %839 = vmatpush2.msra.mxu0 0.0
    %840 = vmatprep.subr.mxu0 0.0
    %841 = vmatpush2.msra.mxu0 0.0
    %842 = vmatprep.subr.mxu0 0.0
    %843 = vmatpush2.msra.mxu0 0.0
    %844 = vmatprep.subr.mxu0 0.0
    %845 = vmatpush2.msra.mxu0 0.0
    %846 = vmatprep.subr.mxu0 0.0
    %847 = vmatpush2.msra.mxu0 0.0
    %848 = vmatprep.subr.mxu0 0.0
    %849 = vmatpush2.msra.mxu0 0.0
    %850 = vmatprep.subr.mxu0 0.0
    %851 = vmatpush2.msra.mxu0 0.0
    %852 = vmatprep.subr.mxu0 0.0
    %853 = vmatpush2.msra.mxu0 0.0
    %854 = vmatprep.subr.mxu0 0.0
    %855 = vmatpush2.msra.mxu0 0.0
    %856 = vmatprep.mubr.f32.mxu0 0.0
    %857 = vmatmul.mubr.f32.gmra.mxu0 %v791
    %v858 = vpop.f32.mrf.mxu0
    %v859 = vadd.f32 %v278, %v858
    %v860 = vpop.f32.mrf.mxu0
    %v861 = vadd.f32 %v282, %v860
    %862 = vdwg.mxu0
    %v863 = vxor.u32 %v859, 2147483648
    %v864 = vmul.f32 %v863, 1.442695
    %v865 = vpow.pop %v864
    %v866 = vadd.f32 %v865, 1.0
    %v867 = vrcp.pop %v866
    %v868 = vmul.f32 1.0, %v867
    %v869 = vtanh.pop %v861
    %v870 = vxor.u32 %v861, 2147483648
    %v871 = vmul.f32 %v870, 1.442695
    %v872 = vpow.pop %v871
    %v873 = vadd.f32 %v872, 1.0
    %v874 = vrcp.pop %v873
    %v875 = vmul.f32 1.0, %v874
    %v876 = vmul.f32 %v868, %v684
    %v877 = vmul.f32 %v868, %v869
    %879 = vrot.lane.b32.xlu0 %v877, 64
    %v880 = vpop.permute.xlu0 %879
    %v882 = vadd.f32 %v876, %v880
    %v883 = vtanh.pop %v882
    %v884 = vmul.f32 %v875, %v883
    %885 = vst.msk [vmem:[#allocation2] sm:$0xff] %vm484, %v884
    %887 = vrot.lane.b32.xlu0 %v884, 64
    %v888 = vpop.permute.xlu0 %887
    %890 = vst.msk [vmem:[%s8 + $0x8] sm:$0xff] %vm286, %v888
    %v891 = vsel %vm286, %v788, 0
    %893 = vmatprep.subr.mxu0 0.0
    %894 = vmatpush1.msra.mxu0 0.0
    %895 = vmatprep.subr.mxu0 0.0
    %896 = vmatpush1.msra.mxu0 0.0
    %897 = vmatprep.subr.mxu0 0.0
    %898 = vmatpush1.msra.mxu0 0.0
    %899 = vmatprep.subr.mxu0 0.0
    %900 = vmatpush1.msra.mxu0 0.0
    %901 = vmatprep.subr.mxu0 0.0
    %902 = vmatpush1.msra.mxu0 0.0
    %903 = vmatprep.subr.mxu0 0.0
    %904 = vmatpush1.msra.mxu0 0.0
    %905 = vmatprep.subr.mxu0 0.0
    %906 = vmatpush1.msra.mxu0 0.0
    %907 = vmatprep.subr.mxu0 0.0
    %908 = vmatpush1.msra.mxu0 0.0
    %909 = vmatprep.subr.mxu0 %v240
    %910 = vmatpush1.msra.mxu0 %v239
    %911 = vmatprep.subr.mxu0 %v238
    %912 = vmatpush1.msra.mxu0 %v237
    %913 = vmatprep.subr.mxu0 %v236
    %914 = vmatpush1.msra.mxu0 %v235
    %915 = vmatprep.subr.mxu0 %v234
    %916 = vmatpush1.msra.mxu0 %v233
    %917 = vmatprep.subr.mxu0 %v232
    %918 = vmatpush1.msra.mxu0 %v231
    %919 = vmatprep.subr.mxu0 %v230
    %920 = vmatpush1.msra.mxu0 %v229
    %921 = vmatprep.subr.mxu0 %v228
    %922 = vmatpush1.msra.mxu0 %v227
    %923 = vmatprep.subr.mxu0 %v226
    %924 = vmatpush1.msra.mxu0 %v225
    %925 = vmatprep.subr.mxu0 0.0
    %926 = vmatpush2.msra.mxu0 0.0
    %927 = vmatprep.subr.mxu0 0.0
    %928 = vmatpush2.msra.mxu0 0.0
    %929 = vmatprep.subr.mxu0 0.0
    %930 = vmatpush2.msra.mxu0 0.0
    %931 = vmatprep.subr.mxu0 0.0
    %932 = vmatpush2.msra.mxu0 0.0
    %933 = vmatprep.subr.mxu0 0.0
    %934 = vmatpush2.msra.mxu0 0.0
    %935 = vmatprep.subr.mxu0 0.0
    %936 = vmatpush2.msra.mxu0 0.0
    %937 = vmatprep.subr.mxu0 0.0
    %938 = vmatpush2.msra.mxu0 0.0
    %939 = vmatprep.subr.mxu0 0.0
    %940 = vmatpush2.msra.mxu0 0.0
    %941 = vmatprep.subr.mxu0 0.0
    %942 = vmatpush2.msra.mxu0 0.0
    %943 = vmatprep.subr.mxu0 0.0
    %944 = vmatpush2.msra.mxu0 0.0
    %945 = vmatprep.subr.mxu0 0.0
    %946 = vmatpush2.msra.mxu0 0.0
    %947 = vmatprep.subr.mxu0 0.0
    %948 = vmatpush2.msra.mxu0 0.0
    %949 = vmatprep.subr.mxu0 0.0
    %950 = vmatpush2.msra.mxu0 0.0
    %951 = vmatprep.subr.mxu0 0.0
    %952 = vmatpush2.msra.mxu0 0.0
    %953 = vmatprep.subr.mxu0 0.0
    %954 = vmatpush2.msra.mxu0 0.0
    %955 = vmatprep.subr.mxu0 0.0
    %956 = vmatpush2.msra.mxu0 0.0
    %957 = vmatprep.mubr.f32.mxu0 0.0
    %958 = vmatmul.mubr.f32.gmra.mxu0 %v891
    %v959 = vpop.f32.mrf.mxu0
    %v960 = vadd.f32 0.0, %v959
    %v961 = vpop.f32.mrf.mxu0
    %v962 = vadd.f32 0.0, %v961
    %963 = vdwg.mxu0
    %v964 = vadd.f32 %v197, %v960
    %v965 = vadd.f32 %v199, %v962
    %v966 = vxor.u32 %v964, 2147483648
    %v967 = vmul.f32 %v966, 1.442695
    %v968 = vpow.pop %v967
    %v969 = vadd.f32 %v968, 1.0
    %v970 = vrcp.pop %v969
    %v971 = vmul.f32 1.0, %v970
    %v972 = vtanh.pop %v965
    %v973 = vxor.u32 %v965, 2147483648
    %v974 = vmul.f32 %v973, 1.442695
    %v975 = vpow.pop %v974
    %v976 = vadd.f32 %v975, 1.0
    %v977 = vrcp.pop %v976
    %v978 = vmul.f32 1.0, %v977
    %v979 = vmul.f32 %v971, %v783
    %v980 = vmul.f32 %v971, %v972
    %982 = vrot.lane.b32.xlu0 %v980, 64
    %v983 = vpop.permute.xlu0 %982
    %v985 = vadd.f32 %v979, %v983
    %v986 = vtanh.pop %v985
    %v987 = vmul.f32 %v978, %v986
    %989 = vrot.lane.b32.xlu0 %v987, 64
    %v990 = vpop.permute.xlu0 %989
    %992 = vst.msk [vmem:[#allocation2] sm:$0xff] %vm286, %v990
    %v993 = vld [vmem:[#allocation2] sm:$0xff]
    %994 = vmatprep.subr.mxu0 %v272
    %995 = vmatpush1.msra.mxu0 %v271
    %996 = vmatprep.subr.mxu0 %v270
    %997 = vmatpush1.msra.mxu0 %v269
    %998 = vmatprep.subr.mxu0 %v268
    %999 = vmatpush1.msra.mxu0 %v267
    %1000 = vmatprep.subr.mxu0 %v266
    %1001 = vmatpush1.msra.mxu0 %v265
    %1002 = vmatprep.subr.mxu0 %v264
    %1003 = vmatpush1.msra.mxu0 %v263
    %1004 = vmatprep.subr.mxu0 %v262
    %1005 = vmatpush1.msra.mxu0 %v261
    %1006 = vmatprep.subr.mxu0 %v260
    %1007 = vmatpush1.msra.mxu0 %v259
    %1008 = vmatprep.subr.mxu0 %v258
    %1009 = vmatpush1.msra.mxu0 %v257
    %1010 = vmatprep.subr.mxu0 %v256
    %1011 = vmatpush1.msra.mxu0 %v255
    %1012 = vmatprep.subr.mxu0 %v254
    %1013 = vmatpush1.msra.mxu0 %v253
    %1014 = vmatprep.subr.mxu0 %v252
    %1015 = vmatpush1.msra.mxu0 %v251
    %1016 = vmatprep.subr.mxu0 %v250
    %1017 = vmatpush1.msra.mxu0 %v249
    %1018 = vmatprep.subr.mxu0 %v248
    %1019 = vmatpush1.msra.mxu0 %v247
    %1020 = vmatprep.subr.mxu0 %v246
    %1021 = vmatpush1.msra.mxu0 %v245
    %1022 = vmatprep.subr.mxu0 %v244
    %1023 = vmatpush1.msra.mxu0 %v243
    %1024 = vmatprep.subr.mxu0 %v242
    %1025 = vmatpush1.msra.mxu0 %v241
    %1026 = vmatprep.subr.mxu0 0.0
    %1027 = vmatpush2.msra.mxu0 0.0
    %1028 = vmatprep.subr.mxu0 0.0
    %1029 = vmatpush2.msra.mxu0 0.0
    %1030 = vmatprep.subr.mxu0 0.0
    %1031 = vmatpush2.msra.mxu0 0.0
    %1032 = vmatprep.subr.mxu0 0.0
    %1033 = vmatpush2.msra.mxu0 0.0
    %1034 = vmatprep.subr.mxu0 0.0
    %1035 = vmatpush2.msra.mxu0 0.0
    %1036 = vmatprep.subr.mxu0 0.0
    %1037 = vmatpush2.msra.mxu0 0.0
    %1038 = vmatprep.subr.mxu0 0.0
    %1039 = vmatpush2.msra.mxu0 0.0
    %1040 = vmatprep.subr.mxu0 0.0
    %1041 = vmatpush2.msra.mxu0 0.0
    %1042 = vmatprep.subr.mxu0 0.0
    %1043 = vmatpush2.msra.mxu0 0.0
    %1044 = vmatprep.subr.mxu0 0.0
    %1045 = vmatpush2.msra.mxu0 0.0
    %1046 = vmatprep.subr.mxu0 0.0
    %1047 = vmatpush2.msra.mxu0 0.0
    %1048 = vmatprep.subr.mxu0 0.0
    %1049 = vmatpush2.msra.mxu0 0.0
    %1050 = vmatprep.subr.mxu0 0.0
    %1051 = vmatpush2.msra.mxu0 0.0
    %1052 = vmatprep.subr.mxu0 0.0
    %1053 = vmatpush2.msra.mxu0 0.0
    %1054 = vmatprep.subr.mxu0 0.0
    %1055 = vmatpush2.msra.mxu0 0.0
    %1056 = vmatprep.subr.mxu0 0.0
    %1057 = vmatpush2.msra.mxu0 0.0
    %1058 = vmatprep.mubr.f32.mxu0 0.0
    %1059 = vmatmul.mubr.f32.gmra.mxu0 %v993
    %v1060 = vpop.f32.mrf.mxu0
    %v1061 = vadd.f32 %v278, %v1060
    %v1062 = vpop.f32.mrf.mxu0
    %v1063 = vadd.f32 %v282, %v1062
    %1064 = vdwg.mxu0
    %v1065 = vxor.u32 %v1061, 2147483648
    %v1066 = vmul.f32 %v1065, 1.442695
    %v1067 = vpow.pop %v1066
    %v1068 = vadd.f32 %v1067, 1.0
    %v1069 = vrcp.pop %v1068
    %v1070 = vmul.f32 1.0, %v1069
    %v1071 = vtanh.pop %v1063
    %v1072 = vxor.u32 %v1063, 2147483648
    %v1073 = vmul.f32 %v1072, 1.442695
    %v1074 = vpow.pop %v1073
    %v1075 = vadd.f32 %v1074, 1.0
    %v1076 = vrcp.pop %v1075
    %v1077 = vmul.f32 1.0, %v1076
    %v1078 = vmul.f32 %v1070, %v882
    %v1079 = vmul.f32 %v1070, %v1071
    %1081 = vrot.lane.b32.xlu0 %v1079, 64
    %v1082 = vpop.permute.xlu0 %1081
    %v1084 = vadd.f32 %v1078, %v1082
    %v1085 = vtanh.pop %v1084
    %v1086 = vmul.f32 %v1077, %v1085
    %1087 = vst.msk [vmem:[#allocation2] sm:$0xff] %vm484, %v1086
    %1088 = vst.msk [vmem:[%s8 + $0x8] sm:$0xff] %vm484, %v1086
    %v1089 = vsel %vm286, %v990, 0
    %1091 = vmatprep.subr.mxu0 0.0
    %1092 = vmatpush1.msra.mxu0 0.0
    %1093 = vmatprep.subr.mxu0 0.0
    %1094 = vmatpush1.msra.mxu0 0.0
    %1095 = vmatprep.subr.mxu0 0.0
    %1096 = vmatpush1.msra.mxu0 0.0
    %1097 = vmatprep.subr.mxu0 0.0
    %1098 = vmatpush1.msra.mxu0 0.0
    %1099 = vmatprep.subr.mxu0 0.0
    %1100 = vmatpush1.msra.mxu0 0.0
    %1101 = vmatprep.subr.mxu0 0.0
    %1102 = vmatpush1.msra.mxu0 0.0
    %1103 = vmatprep.subr.mxu0 0.0
    %1104 = vmatpush1.msra.mxu0 0.0
    %1105 = vmatprep.subr.mxu0 0.0
    %1106 = vmatpush1.msra.mxu0 0.0
    %1107 = vmatprep.subr.mxu0 %v240
    %1108 = vmatpush1.msra.mxu0 %v239
    %1109 = vmatprep.subr.mxu0 %v238
    %1110 = vmatpush1.msra.mxu0 %v237
    %1111 = vmatprep.subr.mxu0 %v236
    %1112 = vmatpush1.msra.mxu0 %v235
    %1113 = vmatprep.subr.mxu0 %v234
    %1114 = vmatpush1.msra.mxu0 %v233
    %1115 = vmatprep.subr.mxu0 %v232
    %1116 = vmatpush1.msra.mxu0 %v231
    %1117 = vmatprep.subr.mxu0 %v230
    %1118 = vmatpush1.msra.mxu0 %v229
    %1119 = vmatprep.subr.mxu0 %v228
    %1120 = vmatpush1.msra.mxu0 %v227
    %1121 = vmatprep.subr.mxu0 %v226
    %1122 = vmatpush1.msra.mxu0 %v225
    %1123 = vmatprep.subr.mxu0 0.0
    %1124 = vmatpush2.msra.mxu0 0.0
    %1125 = vmatprep.subr.mxu0 0.0
    %1126 = vmatpush2.msra.mxu0 0.0
    %1127 = vmatprep.subr.mxu0 0.0
    %1128 = vmatpush2.msra.mxu0 0.0
    %1129 = vmatprep.subr.mxu0 0.0
    %1130 = vmatpush2.msra.mxu0 0.0
    %1131 = vmatprep.subr.mxu0 0.0
    %1132 = vmatpush2.msra.mxu0 0.0
    %1133 = vmatprep.subr.mxu0 0.0
    %1134 = vmatpush2.msra.mxu0 0.0
    %1135 = vmatprep.subr.mxu0 0.0
    %1136 = vmatpush2.msra.mxu0 0.0
    %1137 = vmatprep.subr.mxu0 0.0
    %1138 = vmatpush2.msra.mxu0 0.0
    %1139 = vmatprep.subr.mxu0 0.0
    %1140 = vmatpush2.msra.mxu0 0.0
    %1141 = vmatprep.subr.mxu0 0.0
    %1142 = vmatpush2.msra.mxu0 0.0
    %1143 = vmatprep.subr.mxu0 0.0
    %1144 = vmatpush2.msra.mxu0 0.0
    %1145 = vmatprep.subr.mxu0 0.0
    %1146 = vmatpush2.msra.mxu0 0.0
    %1147 = vmatprep.subr.mxu0 0.0
    %1148 = vmatpush2.msra.mxu0 0.0
    %1149 = vmatprep.subr.mxu0 0.0
    %1150 = vmatpush2.msra.mxu0 0.0
    %1151 = vmatprep.subr.mxu0 0.0
    %1152 = vmatpush2.msra.mxu0 0.0
    %1153 = vmatprep.subr.mxu0 0.0
    %1154 = vmatpush2.msra.mxu0 0.0
    %1155 = vmatprep.mubr.f32.mxu0 0.0
    %1156 = vmatmul.mubr.f32.gmra.mxu0 %v1089
    %v1157 = vpop.f32.mrf.mxu0
    %v1158 = vadd.f32 0.0, %v1157
    %v1159 = vpop.f32.mrf.mxu0
    %v1160 = vadd.f32 0.0, %v1159
    %1161 = vdwg.mxu0
    %v1162 = vadd.f32 %v203, %v1158
    %v1163 = vadd.f32 %v205, %v1160
    %v1164 = vxor.u32 %v1162, 2147483648
    %v1165 = vmul.f32 %v1164, 1.442695
    %v1166 = vpow.pop %v1165
    %v1167 = vadd.f32 %v1166, 1.0
    %v1168 = vrcp.pop %v1167
    %v1169 = vmul.f32 1.0, %v1168
    %v1170 = vtanh.pop %v1163
    %v1171 = vxor.u32 %v1163, 2147483648
    %v1172 = vmul.f32 %v1171, 1.442695
    %v1173 = vpow.pop %v1172
    %v1174 = vadd.f32 %v1173, 1.0
    %v1175 = vrcp.pop %v1174
    %v1176 = vmul.f32 1.0, %v1175
    %v1177 = vmul.f32 %v1169, %v985
    %v1178 = vmul.f32 %v1169, %v1170
    %1180 = vrot.lane.b32.xlu0 %v1178, 64
    %v1181 = vpop.permute.xlu0 %1180
    %v1183 = vadd.f32 %v1177, %v1181
    %v1184 = vtanh.pop %v1183
    %v1185 = vmul.f32 %v1176, %v1184
    %1187 = vrot.lane.b32.xlu0 %v1185, 64
    %v1188 = vpop.permute.xlu0 %1187
    %1190 = vst.msk [vmem:[#allocation2] sm:$0xff] %vm286, %v1188
    %v1191 = vld [vmem:[#allocation2] sm:$0xff]
    %1192 = vmatprep.subr.mxu0 %v272
    %1193 = vmatpush1.msra.mxu0 %v271
    %1194 = vmatprep.subr.mxu0 %v270
    %1195 = vmatpush1.msra.mxu0 %v269
    %1196 = vmatprep.subr.mxu0 %v268
    %1197 = vmatpush1.msra.mxu0 %v267
    %1198 = vmatprep.subr.mxu0 %v266
    %1199 = vmatpush1.msra.mxu0 %v265
    %1200 = vmatprep.subr.mxu0 %v264
    %1201 = vmatpush1.msra.mxu0 %v263
    %1202 = vmatprep.subr.mxu0 %v262
    %1203 = vmatpush1.msra.mxu0 %v261
    %1204 = vmatprep.subr.mxu0 %v260
    %1205 = vmatpush1.msra.mxu0 %v259
    %1206 = vmatprep.subr.mxu0 %v258
    %1207 = vmatpush1.msra.mxu0 %v257
    %1208 = vmatprep.subr.mxu0 %v256
    %1209 = vmatpush1.msra.mxu0 %v255
    %1210 = vmatprep.subr.mxu0 %v254
    %1211 = vmatpush1.msra.mxu0 %v253
    %1212 = vmatprep.subr.mxu0 %v252
    %1213 = vmatpush1.msra.mxu0 %v251
    %1214 = vmatprep.subr.mxu0 %v250
    %1215 = vmatpush1.msra.mxu0 %v249
    %1216 = vmatprep.subr.mxu0 %v248
    %1217 = vmatpush1.msra.mxu0 %v247
    %1218 = vmatprep.subr.mxu0 %v246
    %1219 = vmatpush1.msra.mxu0 %v245
    %1220 = vmatprep.subr.mxu0 %v244
    %1221 = vmatpush1.msra.mxu0 %v243
    %1222 = vmatprep.subr.mxu0 %v242
    %1223 = vmatpush1.msra.mxu0 %v241
    %1224 = vmatprep.subr.mxu0 0.0
    %1225 = vmatpush2.msra.mxu0 0.0
    %1226 = vmatprep.subr.mxu0 0.0
    %1227 = vmatpush2.msra.mxu0 0.0
    %1228 = vmatprep.subr.mxu0 0.0
    %1229 = vmatpush2.msra.mxu0 0.0
    %1230 = vmatprep.subr.mxu0 0.0
    %1231 = vmatpush2.msra.mxu0 0.0
    %1232 = vmatprep.subr.mxu0 0.0
    %1233 = vmatpush2.msra.mxu0 0.0
    %1234 = vmatprep.subr.mxu0 0.0
    %1235 = vmatpush2.msra.mxu0 0.0
    %1236 = vmatprep.subr.mxu0 0.0
    %1237 = vmatpush2.msra.mxu0 0.0
    %1238 = vmatprep.subr.mxu0 0.0
    %1239 = vmatpush2.msra.mxu0 0.0
    %1240 = vmatprep.subr.mxu0 0.0
    %1241 = vmatpush2.msra.mxu0 0.0
    %1242 = vmatprep.subr.mxu0 0.0
    %1243 = vmatpush2.msra.mxu0 0.0
    %1244 = vmatprep.subr.mxu0 0.0
    %1245 = vmatpush2.msra.mxu0 0.0
    %1246 = vmatprep.subr.mxu0 0.0
    %1247 = vmatpush2.msra.mxu0 0.0
    %1248 = vmatprep.subr.mxu0 0.0
    %1249 = vmatpush2.msra.mxu0 0.0
    %1250 = vmatprep.subr.mxu0 0.0
    %1251 = vmatpush2.msra.mxu0 0.0
    %1252 = vmatprep.subr.mxu0 0.0
    %1253 = vmatpush2.msra.mxu0 0.0
    %1254 = vmatprep.subr.mxu0 0.0
    %1255 = vmatpush2.msra.mxu0 0.0
    %1256 = vmatprep.mubr.f32.mxu0 0.0
    %1257 = vmatmul.mubr.f32.gmra.mxu0 %v1191
    %v1258 = vpop.f32.mrf.mxu0
    %v1259 = vadd.f32 %v278, %v1258
    %v1260 = vpop.f32.mrf.mxu0
    %v1261 = vadd.f32 %v282, %v1260
    %1262 = vdwg.mxu0
    %v1263 = vxor.u32 %v1259, 2147483648
    %v1264 = vmul.f32 %v1263, 1.442695
    %v1265 = vpow.pop %v1264
    %v1266 = vadd.f32 %v1265, 1.0
    %v1267 = vrcp.pop %v1266
    %v1268 = vmul.f32 1.0, %v1267
    %v1269 = vtanh.pop %v1261
    %v1270 = vxor.u32 %v1261, 2147483648
    %v1271 = vmul.f32 %v1270, 1.442695
    %v1272 = vpow.pop %v1271
    %v1273 = vadd.f32 %v1272, 1.0
    %v1274 = vrcp.pop %v1273
    %v1275 = vmul.f32 1.0, %v1274
    %v1276 = vmul.f32 %v1268, %v1084
    %v1277 = vmul.f32 %v1268, %v1269
    %1279 = vrot.lane.b32.xlu0 %v1277, 64
    %v1280 = vpop.permute.xlu0 %1279
    %v1282 = vadd.f32 %v1276, %v1280
    %v1283 = vtanh.pop %v1282
    %v1284 = vmul.f32 %v1275, %v1283
    %1285 = vst.msk [vmem:[#allocation2] sm:$0xff] %vm484, %v1284
    %1287 = vrot.lane.b32.xlu0 %v1284, 64
    %v1288 = vpop.permute.xlu0 %1287
    %1290 = vst.msk [vmem:[%s8 + $0x10] sm:$0xff] %vm286, %v1288
    %v1291 = vsel %vm286, %v1188, 0
    %1293 = vmatprep.subr.mxu0 0.0
    %1294 = vmatpush1.msra.mxu0 0.0
    %1295 = vmatprep.subr.mxu0 0.0
    %1296 = vmatpush1.msra.mxu0 0.0
    %1297 = vmatprep.subr.mxu0 0.0
    %1298 = vmatpush1.msra.mxu0 0.0
    %1299 = vmatprep.subr.mxu0 0.0
    %1300 = vmatpush1.msra.mxu0 0.0
    %1301 = vmatprep.subr.mxu0 0.0
    %1302 = vmatpush1.msra.mxu0 0.0
    %1303 = vmatprep.subr.mxu0 0.0
    %1304 = vmatpush1.msra.mxu0 0.0
    %1305 = vmatprep.subr.mxu0 0.0
    %1306 = vmatpush1.msra.mxu0 0.0
    %1307 = vmatprep.subr.mxu0 0.0
    %1308 = vmatpush1.msra.mxu0 0.0
    %1309 = vmatprep.subr.mxu0 %v240
    %1310 = vmatpush1.msra.mxu0 %v239
    %1311 = vmatprep.subr.mxu0 %v238
    %1312 = vmatpush1.msra.mxu0 %v237
    %1313 = vmatprep.subr.mxu0 %v236
    %1314 = vmatpush1.msra.mxu0 %v235
    %1315 = vmatprep.subr.mxu0 %v234
    %1316 = vmatpush1.msra.mxu0 %v233
    %1317 = vmatprep.subr.mxu0 %v232
    %1318 = vmatpush1.msra.mxu0 %v231
    %1319 = vmatprep.subr.mxu0 %v230
    %1320 = vmatpush1.msra.mxu0 %v229
    %1321 = vmatprep.subr.mxu0 %v228
    %1322 = vmatpush1.msra.mxu0 %v227
    %1323 = vmatprep.subr.mxu0 %v226
    %1324 = vmatpush1.msra.mxu0 %v225
    %1325 = vmatprep.subr.mxu0 0.0
    %1326 = vmatpush2.msra.mxu0 0.0
    %1327 = vmatprep.subr.mxu0 0.0
    %1328 = vmatpush2.msra.mxu0 0.0
    %1329 = vmatprep.subr.mxu0 0.0
    %1330 = vmatpush2.msra.mxu0 0.0
    %1331 = vmatprep.subr.mxu0 0.0
    %1332 = vmatpush2.msra.mxu0 0.0
    %1333 = vmatprep.subr.mxu0 0.0
    %1334 = vmatpush2.msra.mxu0 0.0
    %1335 = vmatprep.subr.mxu0 0.0
    %1336 = vmatpush2.msra.mxu0 0.0
    %1337 = vmatprep.subr.mxu0 0.0
    %1338 = vmatpush2.msra.mxu0 0.0
    %1339 = vmatprep.subr.mxu0 0.0
    %1340 = vmatpush2.msra.mxu0 0.0
    %1341 = vmatprep.subr.mxu0 0.0
    %1342 = vmatpush2.msra.mxu0 0.0
    %1343 = vmatprep.subr.mxu0 0.0
    %1344 = vmatpush2.msra.mxu0 0.0
    %1345 = vmatprep.subr.mxu0 0.0
    %1346 = vmatpush2.msra.mxu0 0.0
    %1347 = vmatprep.subr.mxu0 0.0
    %1348 = vmatpush2.msra.mxu0 0.0
    %1349 = vmatprep.subr.mxu0 0.0
    %1350 = vmatpush2.msra.mxu0 0.0
    %1351 = vmatprep.subr.mxu0 0.0
    %1352 = vmatpush2.msra.mxu0 0.0
    %1353 = vmatprep.subr.mxu0 0.0
    %1354 = vmatpush2.msra.mxu0 0.0
    %1355 = vmatprep.subr.mxu0 0.0
    %1356 = vmatpush2.msra.mxu0 0.0
    %1357 = vmatprep.mubr.f32.mxu0 0.0
    %1358 = vmatmul.mubr.f32.gmra.mxu0 %v1291
    %v1359 = vpop.f32.mrf.mxu0
    %v1360 = vadd.f32 0.0, %v1359
    %v1361 = vpop.f32.mrf.mxu0
    %v1362 = vadd.f32 0.0, %v1361
    %1363 = vdwg.mxu0
    %v1364 = vadd.f32 %v209, %v1360
    %v1365 = vadd.f32 %v211, %v1362
    %v1366 = vxor.u32 %v1364, 2147483648
    %v1367 = vmul.f32 %v1366, 1.442695
    %v1368 = vpow.pop %v1367
    %v1369 = vadd.f32 %v1368, 1.0
    %v1370 = vrcp.pop %v1369
    %v1371 = vmul.f32 1.0, %v1370
    %v1372 = vtanh.pop %v1365
    %v1373 = vxor.u32 %v1365, 2147483648
    %v1374 = vmul.f32 %v1373, 1.442695
    %v1375 = vpow.pop %v1374
    %v1376 = vadd.f32 %v1375, 1.0
    %v1377 = vrcp.pop %v1376
    %v1378 = vmul.f32 1.0, %v1377
    %v1379 = vmul.f32 %v1371, %v1183
    %v1380 = vmul.f32 %v1371, %v1372
    %1382 = vrot.lane.b32.xlu0 %v1380, 64
    %v1383 = vpop.permute.xlu0 %1382
    %v1385 = vadd.f32 %v1379, %v1383
    %v1386 = vtanh.pop %v1385
    %v1387 = vmul.f32 %v1378, %v1386
    %1389 = vrot.lane.b32.xlu0 %v1387, 64
    %v1390 = vpop.permute.xlu0 %1389
    %1392 = vst.msk [vmem:[#allocation2] sm:$0xff] %vm286, %v1390
    %v1393 = vld [vmem:[#allocation2] sm:$0xff]
    %1394 = vmatprep.subr.mxu0 %v272
    %1395 = vmatpush1.msra.mxu0 %v271
    %1396 = vmatprep.subr.mxu0 %v270
    %1397 = vmatpush1.msra.mxu0 %v269
    %1398 = vmatprep.subr.mxu0 %v268
    %1399 = vmatpush1.msra.mxu0 %v267
    %1400 = vmatprep.subr.mxu0 %v266
    %1401 = vmatpush1.msra.mxu0 %v265
    %1402 = vmatprep.subr.mxu0 %v264
    %1403 = vmatpush1.msra.mxu0 %v263
    %1404 = vmatprep.subr.mxu0 %v262
    %1405 = vmatpush1.msra.mxu0 %v261
    %1406 = vmatprep.subr.mxu0 %v260
    %1407 = vmatpush1.msra.mxu0 %v259
    %1408 = vmatprep.subr.mxu0 %v258
    %1409 = vmatpush1.msra.mxu0 %v257
    %1410 = vmatprep.subr.mxu0 %v256
    %1411 = vmatpush1.msra.mxu0 %v255
    %1412 = vmatprep.subr.mxu0 %v254
    %1413 = vmatpush1.msra.mxu0 %v253
    %1414 = vmatprep.subr.mxu0 %v252
    %1415 = vmatpush1.msra.mxu0 %v251
    %1416 = vmatprep.subr.mxu0 %v250
    %1417 = vmatpush1.msra.mxu0 %v249
    %1418 = vmatprep.subr.mxu0 %v248
    %1419 = vmatpush1.msra.mxu0 %v247
    %1420 = vmatprep.subr.mxu0 %v246
    %1421 = vmatpush1.msra.mxu0 %v245
    %1422 = vmatprep.subr.mxu0 %v244
    %1423 = vmatpush1.msra.mxu0 %v243
    %1424 = vmatprep.subr.mxu0 %v242
    %1425 = vmatpush1.msra.mxu0 %v241
    %1426 = vmatprep.subr.mxu0 0.0
    %1427 = vmatpush2.msra.mxu0 0.0
    %1428 = vmatprep.subr.mxu0 0.0
    %1429 = vmatpush2.msra.mxu0 0.0
    %1430 = vmatprep.subr.mxu0 0.0
    %1431 = vmatpush2.msra.mxu0 0.0
    %1432 = vmatprep.subr.mxu0 0.0
    %1433 = vmatpush2.msra.mxu0 0.0
    %1434 = vmatprep.subr.mxu0 0.0
    %1435 = vmatpush2.msra.mxu0 0.0
    %1436 = vmatprep.subr.mxu0 0.0
    %1437 = vmatpush2.msra.mxu0 0.0
    %1438 = vmatprep.subr.mxu0 0.0
    %1439 = vmatpush2.msra.mxu0 0.0
    %1440 = vmatprep.subr.mxu0 0.0
    %1441 = vmatpush2.msra.mxu0 0.0
    %1442 = vmatprep.subr.mxu0 0.0
    %1443 = vmatpush2.msra.mxu0 0.0
    %1444 = vmatprep.subr.mxu0 0.0
    %1445 = vmatpush2.msra.mxu0 0.0
    %1446 = vmatprep.subr.mxu0 0.0
    %1447 = vmatpush2.msra.mxu0 0.0
    %1448 = vmatprep.subr.mxu0 0.0
    %1449 = vmatpush2.msra.mxu0 0.0
    %1450 = vmatprep.subr.mxu0 0.0
    %1451 = vmatpush2.msra.mxu0 0.0
    %1452 = vmatprep.subr.mxu0 0.0
    %1453 = vmatpush2.msra.mxu0 0.0
    %1454 = vmatprep.subr.mxu0 0.0
    %1455 = vmatpush2.msra.mxu0 0.0
    %1456 = vmatprep.subr.mxu0 0.0
    %1457 = vmatpush2.msra.mxu0 0.0
    %1458 = vmatprep.mubr.f32.mxu0 0.0
    %1459 = vmatmul.mubr.f32.gmra.mxu0 %v1393
    %v1460 = vpop.f32.mrf.mxu0
    %v1461 = vadd.f32 %v278, %v1460
    %v1462 = vpop.f32.mrf.mxu0
    %v1463 = vadd.f32 %v282, %v1462
    %1464 = vdwg.mxu0
    %v1465 = vxor.u32 %v1461, 2147483648
    %v1466 = vmul.f32 %v1465, 1.442695
    %v1467 = vpow.pop %v1466
    %v1468 = vadd.f32 %v1467, 1.0
    %v1469 = vrcp.pop %v1468
    %v1470 = vmul.f32 1.0, %v1469
    %v1471 = vtanh.pop %v1463
    %v1472 = vxor.u32 %v1463, 2147483648
    %v1473 = vmul.f32 %v1472, 1.442695
    %v1474 = vpow.pop %v1473
    %v1475 = vadd.f32 %v1474, 1.0
    %v1476 = vrcp.pop %v1475
    %v1477 = vmul.f32 1.0, %v1476
    %v1478 = vmul.f32 %v1470, %v1282
    %v1479 = vmul.f32 %v1470, %v1471
    %1481 = vrot.lane.b32.xlu0 %v1479, 64
    %v1482 = vpop.permute.xlu0 %1481
    %v1484 = vadd.f32 %v1478, %v1482
    %v1485 = vtanh.pop %v1484
    %v1486 = vmul.f32 %v1477, %v1485
    %1487 = vst.msk [vmem:[#allocation2] sm:$0xff] %vm484, %v1486
    %1488 = vst.msk [vmem:[%s8 + $0x10] sm:$0xff] %vm484, %v1486
    %v1489 = vsel %vm286, %v1390, 0
    %1491 = vmatprep.subr.mxu0 0.0
    %1492 = vmatpush1.msra.mxu0 0.0
    %1493 = vmatprep.subr.mxu0 0.0
    %1494 = vmatpush1.msra.mxu0 0.0
    %1495 = vmatprep.subr.mxu0 0.0
    %1496 = vmatpush1.msra.mxu0 0.0
    %1497 = vmatprep.subr.mxu0 0.0
    %1498 = vmatpush1.msra.mxu0 0.0
    %1499 = vmatprep.subr.mxu0 0.0
    %1500 = vmatpush1.msra.mxu0 0.0
    %1501 = vmatprep.subr.mxu0 0.0
    %1502 = vmatpush1.msra.mxu0 0.0
    %1503 = vmatprep.subr.mxu0 0.0
    %1504 = vmatpush1.msra.mxu0 0.0
    %1505 = vmatprep.subr.mxu0 0.0
    %1506 = vmatpush1.msra.mxu0 0.0
    %1507 = vmatprep.subr.mxu0 %v240
    %1508 = vmatpush1.msra.mxu0 %v239
    %1509 = vmatprep.subr.mxu0 %v238
    %1510 = vmatpush1.msra.mxu0 %v237
    %1511 = vmatprep.subr.mxu0 %v236
    %1512 = vmatpush1.msra.mxu0 %v235
    %1513 = vmatprep.subr.mxu0 %v234
    %1514 = vmatpush1.msra.mxu0 %v233
    %1515 = vmatprep.subr.mxu0 %v232
    %1516 = vmatpush1.msra.mxu0 %v231
    %1517 = vmatprep.subr.mxu0 %v230
    %1518 = vmatpush1.msra.mxu0 %v229
    %1519 = vmatprep.subr.mxu0 %v228
    %1520 = vmatpush1.msra.mxu0 %v227
    %1521 = vmatprep.subr.mxu0 %v226
    %1522 = vmatpush1.msra.mxu0 %v225
    %1523 = vmatprep.subr.mxu0 0.0
    %1524 = vmatpush2.msra.mxu0 0.0
    %1525 = vmatprep.subr.mxu0 0.0
    %1526 = vmatpush2.msra.mxu0 0.0
    %1527 = vmatprep.subr.mxu0 0.0
    %1528 = vmatpush2.msra.mxu0 0.0
    %1529 = vmatprep.subr.mxu0 0.0
    %1530 = vmatpush2.msra.mxu0 0.0
    %1531 = vmatprep.subr.mxu0 0.0
    %1532 = vmatpush2.msra.mxu0 0.0
    %1533 = vmatprep.subr.mxu0 0.0
    %1534 = vmatpush2.msra.mxu0 0.0
    %1535 = vmatprep.subr.mxu0 0.0
    %1536 = vmatpush2.msra.mxu0 0.0
    %1537 = vmatprep.subr.mxu0 0.0
    %1538 = vmatpush2.msra.mxu0 0.0
    %1539 = vmatprep.subr.mxu0 0.0
    %1540 = vmatpush2.msra.mxu0 0.0
    %1541 = vmatprep.subr.mxu0 0.0
    %1542 = vmatpush2.msra.mxu0 0.0
    %1543 = vmatprep.subr.mxu0 0.0
    %1544 = vmatpush2.msra.mxu0 0.0
    %1545 = vmatprep.subr.mxu0 0.0
    %1546 = vmatpush2.msra.mxu0 0.0
    %1547 = vmatprep.subr.mxu0 0.0
    %1548 = vmatpush2.msra.mxu0 0.0
    %1549 = vmatprep.subr.mxu0 0.0
    %1550 = vmatpush2.msra.mxu0 0.0
    %1551 = vmatprep.subr.mxu0 0.0
    %1552 = vmatpush2.msra.mxu0 0.0
    %1553 = vmatprep.subr.mxu0 0.0
    %1554 = vmatpush2.msra.mxu0 0.0
    %1555 = vmatprep.mubr.f32.mxu0 0.0
    %1556 = vmatmul.mubr.f32.gmra.mxu0 %v1489
    %v1557 = vpop.f32.mrf.mxu0
    %v1558 = vadd.f32 0.0, %v1557
    %v1559 = vpop.f32.mrf.mxu0
    %v1560 = vadd.f32 0.0, %v1559
    %1561 = vdwg.mxu0
    %v1562 = vadd.f32 %v215, %v1558
    %v1563 = vadd.f32 %v217, %v1560
    %v1564 = vxor.u32 %v1562, 2147483648
    %v1565 = vmul.f32 %v1564, 1.442695
    %v1566 = vpow.pop %v1565
    %v1567 = vadd.f32 %v1566, 1.0
    %v1568 = vrcp.pop %v1567
    %v1569 = vmul.f32 1.0, %v1568
    %v1570 = vtanh.pop %v1563
    %v1571 = vxor.u32 %v1563, 2147483648
    %v1572 = vmul.f32 %v1571, 1.442695
    %v1573 = vpow.pop %v1572
    %v1574 = vadd.f32 %v1573, 1.0
    %v1575 = vrcp.pop %v1574
    %v1576 = vmul.f32 1.0, %v1575
    %v1577 = vmul.f32 %v1569, %v1385
    %v1578 = vmul.f32 %v1569, %v1570
    %1580 = vrot.lane.b32.xlu0 %v1578, 64
    %v1581 = vpop.permute.xlu0 %1580
    %v1583 = vadd.f32 %v1577, %v1581
    %v1584 = vtanh.pop %v1583
    %v1585 = vmul.f32 %v1576, %v1584
    %1587 = vrot.lane.b32.xlu0 %v1585, 64
    %v1588 = vpop.permute.xlu0 %1587
    %1590 = vst.msk [vmem:[#allocation2] sm:$0xff] %vm286, %v1588
    %v1591 = vld [vmem:[#allocation2] sm:$0xff]
    %1592 = vmatprep.subr.mxu0 %v272
    %1593 = vmatpush1.msra.mxu0 %v271
    %1594 = vmatprep.subr.mxu0 %v270
    %1595 = vmatpush1.msra.mxu0 %v269
    %1596 = vmatprep.subr.mxu0 %v268
    %1597 = vmatpush1.msra.mxu0 %v267
    %1598 = vmatprep.subr.mxu0 %v266
    %1599 = vmatpush1.msra.mxu0 %v265
    %1600 = vmatprep.subr.mxu0 %v264
    %1601 = vmatpush1.msra.mxu0 %v263
    %1602 = vmatprep.subr.mxu0 %v262
    %1603 = vmatpush1.msra.mxu0 %v261
    %1604 = vmatprep.subr.mxu0 %v260
    %1605 = vmatpush1.msra.mxu0 %v259
    %1606 = vmatprep.subr.mxu0 %v258
    %1607 = vmatpush1.msra.mxu0 %v257
    %1608 = vmatprep.subr.mxu0 %v256
    %1609 = vmatpush1.msra.mxu0 %v255
    %1610 = vmatprep.subr.mxu0 %v254
    %1611 = vmatpush1.msra.mxu0 %v253
    %1612 = vmatprep.subr.mxu0 %v252
    %1613 = vmatpush1.msra.mxu0 %v251
    %1614 = vmatprep.subr.mxu0 %v250
    %1615 = vmatpush1.msra.mxu0 %v249
    %1616 = vmatprep.subr.mxu0 %v248
    %1617 = vmatpush1.msra.mxu0 %v247
    %1618 = vmatprep.subr.mxu0 %v246
    %1619 = vmatpush1.msra.mxu0 %v245
    %1620 = vmatprep.subr.mxu0 %v244
    %1621 = vmatpush1.msra.mxu0 %v243
    %1622 = vmatprep.subr.mxu0 %v242
    %1623 = vmatpush1.msra.mxu0 %v241
    %1624 = vmatprep.subr.mxu0 0.0
    %1625 = vmatpush2.msra.mxu0 0.0
    %1626 = vmatprep.subr.mxu0 0.0
    %1627 = vmatpush2.msra.mxu0 0.0
    %1628 = vmatprep.subr.mxu0 0.0
    %1629 = vmatpush2.msra.mxu0 0.0
    %1630 = vmatprep.subr.mxu0 0.0
    %1631 = vmatpush2.msra.mxu0 0.0
    %1632 = vmatprep.subr.mxu0 0.0
    %1633 = vmatpush2.msra.mxu0 0.0
    %1634 = vmatprep.subr.mxu0 0.0
    %1635 = vmatpush2.msra.mxu0 0.0
    %1636 = vmatprep.subr.mxu0 0.0
    %1637 = vmatpush2.msra.mxu0 0.0
    %1638 = vmatprep.subr.mxu0 0.0
    %1639 = vmatpush2.msra.mxu0 0.0
    %1640 = vmatprep.subr.mxu0 0.0
    %1641 = vmatpush2.msra.mxu0 0.0
    %1642 = vmatprep.subr.mxu0 0.0
    %1643 = vmatpush2.msra.mxu0 0.0
    %1644 = vmatprep.subr.mxu0 0.0
    %1645 = vmatpush2.msra.mxu0 0.0
    %1646 = vmatprep.subr.mxu0 0.0
    %1647 = vmatpush2.msra.mxu0 0.0
    %1648 = vmatprep.subr.mxu0 0.0
    %1649 = vmatpush2.msra.mxu0 0.0
    %1650 = vmatprep.subr.mxu0 0.0
    %1651 = vmatpush2.msra.mxu0 0.0
    %1652 = vmatprep.subr.mxu0 0.0
    %1653 = vmatpush2.msra.mxu0 0.0
    %1654 = vmatprep.subr.mxu0 0.0
    %1655 = vmatpush2.msra.mxu0 0.0
    %1656 = vmatprep.mubr.f32.mxu0 0.0
    %1657 = vmatmul.mubr.f32.gmra.mxu0 %v1591
    %v1658 = vpop.f32.mrf.mxu0
    %v1659 = vadd.f32 %v278, %v1658
    %v1660 = vpop.f32.mrf.mxu0
    %v1661 = vadd.f32 %v282, %v1660
    %1662 = vdwg.mxu0
    %v1663 = vxor.u32 %v1659, 2147483648
    %v1664 = vmul.f32 %v1663, 1.442695
    %v1665 = vpow.pop %v1664
    %v1666 = vadd.f32 %v1665, 1.0
    %v1667 = vrcp.pop %v1666
    %v1668 = vmul.f32 1.0, %v1667
    %v1669 = vtanh.pop %v1661
    %v1670 = vxor.u32 %v1661, 2147483648
    %v1671 = vmul.f32 %v1670, 1.442695
    %v1672 = vpow.pop %v1671
    %v1673 = vadd.f32 %v1672, 1.0
    %v1674 = vrcp.pop %v1673
    %v1675 = vmul.f32 1.0, %v1674
    %v1676 = vmul.f32 %v1668, %v1484
    %v1677 = vmul.f32 %v1668, %v1669
    %1679 = vrot.lane.b32.xlu0 %v1677, 64
    %v1680 = vpop.permute.xlu0 %1679
    %v1682 = vadd.f32 %v1676, %v1680
    %v1683 = vtanh.pop %v1682
    %v1684 = vmul.f32 %v1675, %v1683
    %1685 = vst.msk [vmem:[#allocation2] sm:$0xff] %vm484, %v1684
    %1687 = vrot.lane.b32.xlu0 %v1684, 64
    %v1688 = vpop.permute.xlu0 %1687
    %1690 = vst.msk [vmem:[%s8 + $0x18] sm:$0xff] %vm286, %v1688
    %v1691 = vsel %vm286, %v1588, 0
    %1693 = vmatprep.subr.mxu0 0.0
    %1694 = vmatpush1.msra.mxu0 0.0
    %1695 = vmatprep.subr.mxu0 0.0
    %1696 = vmatpush1.msra.mxu0 0.0
    %1697 = vmatprep.subr.mxu0 0.0
    %1698 = vmatpush1.msra.mxu0 0.0
    %1699 = vmatprep.subr.mxu0 0.0
    %1700 = vmatpush1.msra.mxu0 0.0
    %1701 = vmatprep.subr.mxu0 0.0
    %1702 = vmatpush1.msra.mxu0 0.0
    %1703 = vmatprep.subr.mxu0 0.0
    %1704 = vmatpush1.msra.mxu0 0.0
    %1705 = vmatprep.subr.mxu0 0.0
    %1706 = vmatpush1.msra.mxu0 0.0
    %1707 = vmatprep.subr.mxu0 0.0
    %1708 = vmatpush1.msra.mxu0 0.0
    %1709 = vmatprep.subr.mxu0 %v240
    %1710 = vmatpush1.msra.mxu0 %v239
    %1711 = vmatprep.subr.mxu0 %v238
    %1712 = vmatpush1.msra.mxu0 %v237
    %1713 = vmatprep.subr.mxu0 %v236
    %1714 = vmatpush1.msra.mxu0 %v235
    %1715 = vmatprep.subr.mxu0 %v234
    %1716 = vmatpush1.msra.mxu0 %v233
    %1717 = vmatprep.subr.mxu0 %v232
    %1718 = vmatpush1.msra.mxu0 %v231
    %1719 = vmatprep.subr.mxu0 %v230
    %1720 = vmatpush1.msra.mxu0 %v229
    %1721 = vmatprep.subr.mxu0 %v228
    %1722 = vmatpush1.msra.mxu0 %v227
    %1723 = vmatprep.subr.mxu0 %v226
    %1724 = vmatpush1.msra.mxu0 %v225
    %1725 = vmatprep.subr.mxu0 0.0
    %1726 = vmatpush2.msra.mxu0 0.0
    %1727 = vmatprep.subr.mxu0 0.0
    %1728 = vmatpush2.msra.mxu0 0.0
    %1729 = vmatprep.subr.mxu0 0.0
    %1730 = vmatpush2.msra.mxu0 0.0
    %1731 = vmatprep.subr.mxu0 0.0
    %1732 = vmatpush2.msra.mxu0 0.0
    %1733 = vmatprep.subr.mxu0 0.0
    %1734 = vmatpush2.msra.mxu0 0.0
    %1735 = vmatprep.subr.mxu0 0.0
    %1736 = vmatpush2.msra.mxu0 0.0
    %1737 = vmatprep.subr.mxu0 0.0
    %1738 = vmatpush2.msra.mxu0 0.0
    %1739 = vmatprep.subr.mxu0 0.0
    %1740 = vmatpush2.msra.mxu0 0.0
    %1741 = vmatprep.subr.mxu0 0.0
    %1742 = vmatpush2.msra.mxu0 0.0
    %1743 = vmatprep.subr.mxu0 0.0
    %1744 = vmatpush2.msra.mxu0 0.0
    %1745 = vmatprep.subr.mxu0 0.0
    %1746 = vmatpush2.msra.mxu0 0.0
    %1747 = vmatprep.subr.mxu0 0.0
    %1748 = vmatpush2.msra.mxu0 0.0
    %1749 = vmatprep.subr.mxu0 0.0
    %1750 = vmatpush2.msra.mxu0 0.0
    %1751 = vmatprep.subr.mxu0 0.0
    %1752 = vmatpush2.msra.mxu0 0.0
    %1753 = vmatprep.subr.mxu0 0.0
    %1754 = vmatpush2.msra.mxu0 0.0
    %1755 = vmatprep.subr.mxu0 0.0
    %1756 = vmatpush2.msra.mxu0 0.0
    %1757 = vmatprep.mubr.f32.mxu0 0.0
    %1758 = vmatmul.mubr.f32.gmra.mxu0 %v1691
    %v1759 = vpop.f32.mrf.mxu0
    %v1760 = vadd.f32 0.0, %v1759
    %v1761 = vpop.f32.mrf.mxu0
    %v1762 = vadd.f32 0.0, %v1761
    %1763 = vdwg.mxu0
    %v1764 = vadd.f32 %v221, %v1760
    %v1765 = vadd.f32 %v223, %v1762
    %v1766 = vxor.u32 %v1764, 2147483648
    %v1767 = vmul.f32 %v1766, 1.442695
    %v1768 = vpow.pop %v1767
    %v1769 = vadd.f32 %v1768, 1.0
    %v1770 = vrcp.pop %v1769
    %v1771 = vmul.f32 1.0, %v1770
    %v1772 = vtanh.pop %v1765
    %v1773 = vxor.u32 %v1765, 2147483648
    %v1774 = vmul.f32 %v1773, 1.442695
    %v1775 = vpow.pop %v1774
    %v1776 = vadd.f32 %v1775, 1.0
    %v1777 = vrcp.pop %v1776
    %v1778 = vmul.f32 1.0, %v1777
    %v1779 = vmul.f32 %v1771, %v1583
    %v1780 = vmul.f32 %v1771, %v1772
    %1782 = vrot.lane.b32.xlu0 %v1780, 64
    %v1783 = vpop.permute.xlu0 %1782
    %v1785 = vadd.f32 %v1779, %v1783
    %v1786 = vtanh.pop %v1785
    %v1787 = vmul.f32 %v1778, %v1786
    %1789 = vrot.lane.b32.xlu0 %v1787, 64
    %v1790 = vpop.permute.xlu0 %1789
    %1792 = vst.msk [vmem:[#allocation2] sm:$0xff] %vm286, %v1790
    %v1793 = vld [vmem:[#allocation2] sm:$0xff]
    %1794 = vmatprep.subr.mxu0 %v272
    %1795 = vmatpush1.msra.mxu0 %v271
    %1796 = vmatprep.subr.mxu0 %v270
    %1797 = vmatpush1.msra.mxu0 %v269
    %1798 = vmatprep.subr.mxu0 %v268
    %1799 = vmatpush1.msra.mxu0 %v267
    %1800 = vmatprep.subr.mxu0 %v266
    %1801 = vmatpush1.msra.mxu0 %v265
    %1802 = vmatprep.subr.mxu0 %v264
    %1803 = vmatpush1.msra.mxu0 %v263
    %1804 = vmatprep.subr.mxu0 %v262
    %1805 = vmatpush1.msra.mxu0 %v261
    %1806 = vmatprep.subr.mxu0 %v260
    %1807 = vmatpush1.msra.mxu0 %v259
    %1808 = vmatprep.subr.mxu0 %v258
    %1809 = vmatpush1.msra.mxu0 %v257
    %1810 = vmatprep.subr.mxu0 %v256
    %1811 = vmatpush1.msra.mxu0 %v255
    %1812 = vmatprep.subr.mxu0 %v254
    %1813 = vmatpush1.msra.mxu0 %v253
    %1814 = vmatprep.subr.mxu0 %v252
    %1815 = vmatpush1.msra.mxu0 %v251
    %1816 = vmatprep.subr.mxu0 %v250
    %1817 = vmatpush1.msra.mxu0 %v249
    %1818 = vmatprep.subr.mxu0 %v248
    %1819 = vmatpush1.msra.mxu0 %v247
    %1820 = vmatprep.subr.mxu0 %v246
    %1821 = vmatpush1.msra.mxu0 %v245
    %1822 = vmatprep.subr.mxu0 %v244
    %1823 = vmatpush1.msra.mxu0 %v243
    %1824 = vmatprep.subr.mxu0 %v242
    %1825 = vmatpush1.msra.mxu0 %v241
    %1826 = vmatprep.subr.mxu0 0.0
    %1827 = vmatpush2.msra.mxu0 0.0
    %1828 = vmatprep.subr.mxu0 0.0
    %1829 = vmatpush2.msra.mxu0 0.0
    %1830 = vmatprep.subr.mxu0 0.0
    %1831 = vmatpush2.msra.mxu0 0.0
    %1832 = vmatprep.subr.mxu0 0.0
    %1833 = vmatpush2.msra.mxu0 0.0
    %1834 = vmatprep.subr.mxu0 0.0
    %1835 = vmatpush2.msra.mxu0 0.0
    %1836 = vmatprep.subr.mxu0 0.0
    %1837 = vmatpush2.msra.mxu0 0.0
    %1838 = vmatprep.subr.mxu0 0.0
    %1839 = vmatpush2.msra.mxu0 0.0
    %1840 = vmatprep.subr.mxu0 0.0
    %1841 = vmatpush2.msra.mxu0 0.0
    %1842 = vmatprep.subr.mxu0 0.0
    %1843 = vmatpush2.msra.mxu0 0.0
    %1844 = vmatprep.subr.mxu0 0.0
    %1845 = vmatpush2.msra.mxu0 0.0
    %1846 = vmatprep.subr.mxu0 0.0
    %1847 = vmatpush2.msra.mxu0 0.0
    %1848 = vmatprep.subr.mxu0 0.0
    %1849 = vmatpush2.msra.mxu0 0.0
    %1850 = vmatprep.subr.mxu0 0.0
    %1851 = vmatpush2.msra.mxu0 0.0
    %1852 = vmatprep.subr.mxu0 0.0
    %1853 = vmatpush2.msra.mxu0 0.0
    %1854 = vmatprep.subr.mxu0 0.0
    %1855 = vmatpush2.msra.mxu0 0.0
    %1856 = vmatprep.subr.mxu0 0.0
    %1857 = vmatpush2.msra.mxu0 0.0
    %1858 = vmatprep.mubr.f32.mxu0 0.0
    %1859 = vmatmul.mubr.f32.gmra.mxu0 %v1793
    %v1860 = vpop.f32.mrf.mxu0
    %v1861 = vadd.f32 %v278, %v1860
    %v1862 = vpop.f32.mrf.mxu0
    %v1863 = vadd.f32 %v282, %v1862
    %1864 = vdwg.mxu0
    %v1865 = vxor.u32 %v1861, 2147483648
    %v1866 = vmul.f32 %v1865, 1.442695
    %v1867 = vpow.pop %v1866
    %v1868 = vadd.f32 %v1867, 1.0
    %v1869 = vrcp.pop %v1868
    %v1870 = vmul.f32 1.0, %v1869
    %v1871 = vtanh.pop %v1863
    %v1872 = vxor.u32 %v1863, 2147483648
    %v1873 = vmul.f32 %v1872, 1.442695
    %v1874 = vpow.pop %v1873
    %v1875 = vadd.f32 %v1874, 1.0
    %v1876 = vrcp.pop %v1875
    %v1877 = vmul.f32 1.0, %v1876
    %v1878 = vmul.f32 %v1870, %v1682
    %v1879 = vmul.f32 %v1870, %v1871
    %1881 = vrot.lane.b32.xlu0 %v1879, 64
    %v1882 = vpop.permute.xlu0 %1881
    %v1884 = vadd.f32 %v1878, %v1882
    %v1885 = vtanh.pop %v1884
    %v1886 = vmul.f32 %v1877, %v1885
    %1887 = vst.msk [vmem:[#allocation2] sm:$0xff] %vm484, %v1886
    %1888 = vst.msk [vmem:[%s8 + $0x18] sm:$0xff] %vm484, %v1886
    %v1889 = vld [vmem:[%s6] sm:$0xff]
    %v1890 = vld [vmem:[%s6 + $0x8] sm:$0xff]
    %v1891 = vld [vmem:[%s6 + $0x10] sm:$0xff]
    %v1892 = vld [vmem:[%s6 + $0x18] sm:$0xff]
    %v1893 = vld [vmem:[%s6 + $0x20] sm:$0xff]
    %v1894 = vld [vmem:[%s6 + $0x28] sm:$0xff]
    %v1895 = vld [vmem:[%s6 + $0x30] sm:$0xff]
    %v1896 = vld [vmem:[%s6 + $0x38] sm:$0xff]
    %v1897 = vld [vmem:[%s7] sm:$0x1]
    %v1899 = vlaneseq
    %v1900 = vshrl.u32 %v1899, 7
    %v1901 = vsub.s32 0, %v1900
    %v1902 = vrot.slane %v1897, %v1901
    %1905 = vrot.lane.b32.xlu0 %v1886, 64
    %v1906 = vpop.permute.xlu0 %1905
    %v1907 = vsel %vm286, %v1906, 0
    %1909 = vmatprep.subr.mxu0 0.0
    %1910 = vmatpush1.msra.mxu0 0.0
    %1911 = vmatprep.subr.mxu0 0.0
    %1912 = vmatpush1.msra.mxu0 0.0
    %1913 = vmatprep.subr.mxu0 0.0
    %1914 = vmatpush1.msra.mxu0 0.0
    %1915 = vmatprep.subr.mxu0 0.0
    %1916 = vmatpush1.msra.mxu0 0.0
    %1917 = vmatprep.subr.mxu0 0.0
    %1918 = vmatpush1.msra.mxu0 0.0
    %1919 = vmatprep.subr.mxu0 0.0
    %1920 = vmatpush1.msra.mxu0 0.0
    %1921 = vmatprep.subr.mxu0 0.0
    %1922 = vmatpush1.msra.mxu0 0.0
    %1923 = vmatprep.subr.mxu0 0.0
    %1924 = vmatpush1.msra.mxu0 0.0
    %1925 = vmatprep.subr.mxu0 0.0
    %1926 = vmatpush1.msra.mxu0 %v1896
    %1927 = vmatprep.subr.mxu0 0.0
    %1928 = vmatpush1.msra.mxu0 %v1895
    %1929 = vmatprep.subr.mxu0 0.0
    %1930 = vmatpush1.msra.mxu0 %v1894
    %1931 = vmatprep.subr.mxu0 0.0
    %1932 = vmatpush1.msra.mxu0 %v1893
    %1933 = vmatprep.subr.mxu0 0.0
    %1934 = vmatpush1.msra.mxu0 %v1892
    %1935 = vmatprep.subr.mxu0 0.0
    %1936 = vmatpush1.msra.mxu0 %v1891
    %1937 = vmatprep.subr.mxu0 0.0
    %1938 = vmatpush1.msra.mxu0 %v1890
    %1939 = vmatprep.subr.mxu0 0.0
    %1940 = vmatpush1.msra.mxu0 %v1889
    %1941 = vmatprep.subr.mxu0 0.0
    %1942 = vmatpush2.msra.mxu0 0.0
    %1943 = vmatprep.subr.mxu0 0.0
    %1944 = vmatpush2.msra.mxu0 0.0
    %1945 = vmatprep.subr.mxu0 0.0
    %1946 = vmatpush2.msra.mxu0 0.0
    %1947 = vmatprep.subr.mxu0 0.0
    %1948 = vmatpush2.msra.mxu0 0.0
    %1949 = vmatprep.subr.mxu0 0.0
    %1950 = vmatpush2.msra.mxu0 0.0
    %1951 = vmatprep.subr.mxu0 0.0
    %1952 = vmatpush2.msra.mxu0 0.0
    %1953 = vmatprep.subr.mxu0 0.0
    %1954 = vmatpush2.msra.mxu0 0.0
    %1955 = vmatprep.subr.mxu0 0.0
    %1956 = vmatpush2.msra.mxu0 0.0
    %1957 = vmatprep.subr.mxu0 0.0
    %1958 = vmatpush2.msra.mxu0 0.0
    %1959 = vmatprep.subr.mxu0 0.0
    %1960 = vmatpush2.msra.mxu0 0.0
    %1961 = vmatprep.subr.mxu0 0.0
    %1962 = vmatpush2.msra.mxu0 0.0
    %1963 = vmatprep.subr.mxu0 0.0
    %1964 = vmatpush2.msra.mxu0 0.0
    %1965 = vmatprep.subr.mxu0 0.0
    %1966 = vmatpush2.msra.mxu0 0.0
    %1967 = vmatprep.subr.mxu0 0.0
    %1968 = vmatpush2.msra.mxu0 0.0
    %1969 = vmatprep.subr.mxu0 0.0
    %1970 = vmatpush2.msra.mxu0 0.0
    %1971 = vmatprep.subr.mxu0 0.0
    %1972 = vmatpush2.msra.mxu0 0.0
    %1973 = vmatprep.mubr.f32.mxu0 0.0
    %1974 = vmatmul.mubr.f32.gmra.mxu0 %v1907
    %v1975 = vpop.f32.mrf.mxu0
    %v1976 = vadd.f32 %v1902, %v1975
    %v1977 = vpop.f32.mrf.mxu0
    %1978 = vdwg.mxu0
    %vm1979 = vcmask 15360
    %1980 = vst.msk [vmem:[%s9] sm:$0xff] %vm1979, %v1976
    // Predicated region
    $region42: #{model_lstm_forward.1} parent=1 // pred_check
      _
    $region43: #{model_lstm_forward.1} parent=1 // pred_check_branch
      %1982 = sbr.rel (0) target = $region45
    $region44: #{model_lstm_forward.1} parent=1 // pred_region
      _
    $region45: #{model_lstm_forward.1} parent=1 // pred_fallthru
      _
    // Predicated region
    $region46: #{model_lstm_forward.1} parent=1 // pred_check
      _
    $region47: #{model_lstm_forward.1} parent=1 // pred_check_branch
      %1984 = sbr.rel (0) target = $region49
    $region48: #{model_lstm_forward.1} parent=1 // pred_region
      _
    $region49: #{model_lstm_forward.1} parent=1 // pred_fallthru
      _
    // Predicated region
    $region50: #{model_lstm_forward.1} parent=1 // pred_check
      _
    $region51: #{model_lstm_forward.1} parent=1 // pred_check_branch
      %1986 = sbr.rel (0) target = $region53
    $region52: #{model_lstm_forward.1} parent=1 // pred_region
      _
    $region53: #{model_lstm_forward.1} parent=1 // pred_fallthru
      _
    // Predicated region
    $region54: #{model_lstm_forward.1} parent=1 // pred_check
      _
    $region55: #{model_lstm_forward.1} parent=1 // pred_check_branch
      %1988 = sbr.rel (0) target = $region57
    $region56: #{model_lstm_forward.1} parent=1 // pred_region
      _
    $region57: #{model_lstm_forward.1} parent=1 // pred_fallthru
      _
    %1989 = vsyncpa [#allocation4], 1
    %1990 = vsyncpa [#allocation6], 1

</llo_original>
